<compile_context>
chip_gen: v7x
topology: tpu7x:2x2x1
jax: 0.10.0
libtpu: 0.0.40
codegen_flags: <defaults>
</compile_context>

<pallas_src>
import functools

import jax
import jax.numpy as jnp
from jax import lax
from jax.experimental import pallas as pl
from jax.experimental.pallas import tpu as pltpu


def _rnn_kernel(num_layers, time_block, batch_pad, *refs):
    """One grid step == one block of `time_block` consecutive time steps.

    refs (in order):
      x_ref    : (TB*BP, E)  bf16  time-major-flattened embeddings of this block
      h0_ref   : (L, BP, H)  f32   initial hidden states
      W_0..W_{L-1}           bf16  (E,H) for layer 0, (H,H) for deeper layers
      U_0..U_{L-1}           bf16  (H,H)
      b_0..b_{L-1}           f32   (1,H)   folded bias  bW_k + bU_k
      V_ref    : (H, D)      bf16
      bV_ref   : (1, D)      f32
      out_ref  : (TB*BP, D)  f32   output slab of this block
      h_ref    : (L, BP, H)  f32   VMEM scratch, hidden-state carry across blocks
      xw_ref   : (TB*BP, H)  f32   VMEM scratch, batched input-to-hidden GEMM
      act_ref  : (TB*BP, H)  f32   VMEM scratch, current layer's hidden states
    """
    L = num_layers
    TB = time_block
    BP = batch_pad

    x_ref, h0_ref = refs[0], refs[1]
    idx = 2
    W_refs = refs[idx:idx + L]; idx += L
    U_refs = refs[idx:idx + L]; idx += L
    b_refs = refs[idx:idx + L]; idx += L
    V_ref, bV_ref = refs[idx], refs[idx + 1]
    out_ref = refs[idx + 2]
    h_ref, xw_ref, act_ref = refs[idx + 3], refs[idx + 4], refs[idx + 5]

    # Load the initial hidden states into the carry on the first time block.
    @pl.when(pl.program_id(0) == 0)
    def _():
        h_ref[...] = h0_ref[...]

    for k in range(L):
        # Batched input-to-hidden GEMM over the whole time block: the MXU sees
        # TB*BP rows instead of B rows per step.  The recurrent dependency only
        # constrains the h @ U matmul inside the time loop below.
        src = x_ref[...] if k == 0 else act_ref[...].astype(jnp.bfloat16)
        xw_ref[...] = (
            jnp.dot(src, W_refs[k][...], preferred_element_type=jnp.float32)
            + b_refs[k][...])

        U_k = U_refs[k][...]  # hoisted out of the time loop

        def step(t, h, _U=U_k):
            off = pl.multiple_of(t * BP, BP)   # BP is a multiple of 8
            z = xw_ref[pl.ds(off, BP), :] + jnp.dot(
                h.astype(jnp.bfloat16), _U, preferred_element_type=jnp.float32)
            h_new = jnp.tanh(z)                # nonlinearity = 'tanh'
            act_ref[pl.ds(off, BP), :] = h_new
            return h_new

        h_ref[k] = lax.fori_loop(0, TB, step, h_ref[k], unroll=True)

    # Deferred output projection: one MXU matmul + one lane-dense-ish store
    # per block instead of a masked (1, B, D) store per time step.
    out_ref[...] = (
        jnp.dot(act_ref[...].astype(jnp.bfloat16), V_ref[...],
                preferred_element_type=jnp.float32)
        + bV_ref[...])


def rnn_forward(embeddings, h0, Ws, Us, bWs, bUs, V, bV, *, time_block=32):
    """embeddings: (B, T, E) f32; h0: (L, B, H) f32.  Returns (B, T, D) f32."""
    B, T, E = embeddings.shape
    L, _, H = h0.shape
    D = V.shape[1]

    BP = ((B + 7) // 8) * 8            # pad batch to a full sublane tile
    TB = min(time_block, T)
    TB += TB % 2                       # keep TB*BP a multiple of 16 (bf16 tile)
    TP = ((T + TB - 1) // TB) * TB     # pad time (causal recurrence: harmless)
    n_blocks = TP // TB

    # Time-major, batch-padded, flattened to 2-D; activations in bf16 to halve
    # the embedding DMA bytes (matmuls accumulate in f32).
    x = jnp.transpose(embeddings, (1, 0, 2))                    # (T, B, E)
    x = jnp.pad(x, ((0, TP - T), (0, BP - B), (0, 0)))          # (TP, BP, E)
    x = x.reshape(TP * BP, E).astype(jnp.bfloat16)

    h0p = jnp.pad(h0, ((0, 0), (0, BP - B), (0, 0))).astype(jnp.float32)

    Wb = [w.astype(jnp.bfloat16) for w in Ws]
    Ub = [u.astype(jnp.bfloat16) for u in Us]
    bs = [(bWs[k] + bUs[k]).astype(jnp.float32) for k in range(L)]  # folded
    Vb = V.astype(jnp.bfloat16)
    bVf = bV.astype(jnp.float32)

    def const_spec(shape):
        return pl.BlockSpec(shape, lambda tb: (0,) * len(shape))

    in_specs = [
        pl.BlockSpec((TB * BP, E), lambda tb: (tb, 0)),   # embedding block
        const_spec(h0p.shape),                            # h0 (read at tb==0)
    ]
    in_specs += [const_spec(w.shape) for w in Wb]
    in_specs += [const_spec(u.shape) for u in Ub]
    in_specs += [const_spec(b.shape) for b in bs]
    in_specs += [const_spec(Vb.shape), const_spec(bVf.shape)]
    # TODO(synk): at production sizes on v7x, mark the constant weight/h0 specs
    # pipeline_mode=pl.Buffered(1) and set vmem_limit_bytes so resident weights
    # are single-buffered inside the 64 MiB VMEM; irrelevant at these shapes.

    out_spec = pl.BlockSpec((TB * BP, D), lambda tb: (tb, 0))

    kernel = functools.partial(_rnn_kernel, L, TB, BP)

    out_flat = pl.pallas_call(
        kernel,
        out_shape=jax.ShapeDtypeStruct((TP * BP, D), jnp.float32),
        grid_spec=pltpu.PrefetchScalarGridSpec(
            num_scalar_prefetch=0,
            grid=(n_blocks,),
            in_specs=in_specs,
            out_specs=out_spec,
            scratch_shapes=[
                pltpu.VMEM((L, BP, H), jnp.float32),      # hidden-state carry
                pltpu.VMEM((TB * BP, H), jnp.float32),    # batched x@W block
                pltpu.VMEM((TB * BP, H), jnp.float32),    # layer activations
            ],
        ),
        compiler_params=pltpu.CompilerParams(
            dimension_semantics=("arbitrary",),  # time blocks carry state
        ),
    )(x, h0p, *Wb, *Ub, *bs, Vb, bVf)

    out = out_flat.reshape(TP, BP, D)[:T, :B]     # drop time/batch padding
    return jnp.transpose(out, (1, 0, 2))          # (B, T, D)


def rnn_reference(embeddings, h0, Ws, Us, bWs, bUs, V, bV):
    """Pure-JAX reference mirroring the PyTorch forward loop, using the same
    bf16-operand / f32-accumulate matmul precision as the kernel."""
    B, T, _ = embeddings.shape
    L = h0.shape[0]

    def mm(a, w):
        return jnp.dot(a.astype(jnp.bfloat16), w.astype(jnp.bfloat16),
                       preferred_element_type=jnp.float32)

    hs = [h0[k].astype(jnp.float32) for k in range(L)]
    ys = []
    for t in range(T):
        inp = embeddings[:, t, :]
        for k in range(L):
            hs[k] = jnp.tanh(mm(inp, Ws[k]) + bWs[k] + mm(hs[k], Us[k]) + bUs[k])
            inp = hs[k]
        ys.append(mm(inp, V) + bV)
    return jnp.stack(ys, axis=1)


if __name__ == "__main__":
    # Small shapes consistent with the module's forward.
    B, T = 2, 8
    E, H, D = 32, 32, 16
    L = 2  # num_layers

    key = jax.random.PRNGKey(0)
    keys = jax.random.split(key, 4 * L + 4)
    ki = iter(keys)

    # Deterministic synthetic parameters (weights stored as (in, out) so the
    # kernel computes x @ W + b, equivalent to torch Linear's x @ W.T + b).
    Ws, Us, bWs, bUs = [], [], [], []
    for k in range(L):
        in_dim = E if k == 0 else H
        Ws.append(jax.random.normal(next(ki), (in_dim, H), jnp.float32) * 0.1)
        Us.append(jax.random.normal(next(ki), (H, H), jnp.float32) * 0.1)
        bWs.append(jax.random.normal(next(ki), (1, H), jnp.float32) * 0.1)
        bUs.append(jax.random.normal(next(ki), (1, H), jnp.float32) * 0.1)
    V = jax.random.normal(next(ki), (H, D), jnp.float32) * 0.1
    bV = jax.random.normal(next(ki), (1, D), jnp.float32) * 0.1

    # Deterministic "xavier-normal"-style initial hidden states (the PyTorch
    # module draws these randomly each forward; here we fix them with a key).
    h0 = jax.random.normal(next(ki), (L, B, H), jnp.float32) * (
        (2.0 / (B + H)) ** 0.5)

    embeddings = jax.random.normal(next(ki), (B, T, E), jnp.float32)

    out = rnn_forward(embeddings, h0, Ws, Us, bWs, bUs, V, bV)
    out = jax.block_until_ready(out)

    ref = rnn_reference(embeddings, h0, Ws, Us, bWs, bUs, V, bV)
    assert out.shape == (B, T, D)
    assert jnp.allclose(out, ref, atol=2e-3, rtol=2e-3), (
        "mismatch vs reference: max abs err = "
        f"{float(jnp.max(jnp.abs(out - ref)))}")

    print("KERNEL_OK")
</pallas_src>

<mosaic_0001>
module attributes {stable_mosaic.version = 11 : i64} {
  func.func @_rnn_kernel(%arg0: i32, %arg1: memref<64x32xbf16, #tpu.memory_space<vmem>>, %arg2: memref<2x8x32xf32, #tpu.memory_space<vmem>>, %arg3: memref<32x32xbf16, #tpu.memory_space<vmem>>, %arg4: memref<32x32xbf16, #tpu.memory_space<vmem>>, %arg5: memref<32x32xbf16, #tpu.memory_space<vmem>>, %arg6: memref<32x32xbf16, #tpu.memory_space<vmem>>, %arg7: memref<1x32xf32, #tpu.memory_space<vmem>>, %arg8: memref<1x32xf32, #tpu.memory_space<vmem>>, %arg9: memref<32x16xbf16, #tpu.memory_space<vmem>>, %arg10: memref<1x16xf32, #tpu.memory_space<vmem>>, %arg11: memref<64x16xf32, #tpu.memory_space<vmem>>, %arg12: memref<2x8x32xf32, #tpu.memory_space<vmem>>, %arg13: memref<64x32xf32, #tpu.memory_space<vmem>>, %arg14: memref<64x32xf32, #tpu.memory_space<vmem>>) attributes {dimension_semantics = [#tpu.dimension_semantics<arbitrary>], iteration_bounds = array<i64: 1>, scalar_prefetch = 0 : i64, scratch_operands = 3 : i64, tpu.core_type = #tpu.core_type<tc>, window_params = [{transform_indices = @transform_0, window_bounds = array<i64: 64, 32>}, {pipeline_mode = #tpu.pipeline_mode<synchronous>, transform_indices = @transform_1, window_bounds = array<i64: 2, 8, 32>}, {pipeline_mode = #tpu.pipeline_mode<synchronous>, transform_indices = @transform_2, window_bounds = array<i64: 32, 32>}, {pipeline_mode = #tpu.pipeline_mode<synchronous>, transform_indices = @transform_3, window_bounds = array<i64: 32, 32>}, {pipeline_mode = #tpu.pipeline_mode<synchronous>, transform_indices = @transform_4, window_bounds = array<i64: 32, 32>}, {pipeline_mode = #tpu.pipeline_mode<synchronous>, transform_indices = @transform_5, window_bounds = array<i64: 32, 32>}, {pipeline_mode = #tpu.pipeline_mode<synchronous>, transform_indices = @transform_6, window_bounds = array<i64: 1, 32>}, {pipeline_mode = #tpu.pipeline_mode<synchronous>, transform_indices = @transform_7, window_bounds = array<i64: 1, 32>}, {pipeline_mode = #tpu.pipeline_mode<synchronous>, transform_indices = @transform_8, window_bounds = array<i64: 32, 16>}, {pipeline_mode = #tpu.pipeline_mode<synchronous>, transform_indices = @transform_9, window_bounds = array<i64: 1, 16>}, {transform_indices = @transform_10, window_bounds = array<i64: 64, 16>}]} {
    %c0_i32 = arith.constant 0 : i32
    %0 = arith.cmpi eq, %arg0, %c0_i32 : i32
    %1 = arith.extui %0 : i1 to i32
    %c0_i32_0 = arith.constant 0 : i32
    %2 = arith.cmpi ne, %1, %c0_i32_0 : i32
    scf.if %2 {
      %c0_115 = arith.constant 0 : index
      %c0_116 = arith.constant 0 : index
      %c0_117 = arith.constant 0 : index
      %198 = vector.load %arg2[%c0_115, %c0_116, %c0_117] : memref<2x8x32xf32, #tpu.memory_space<vmem>>, vector<2x8x32xf32>
      %c0_118 = arith.constant 0 : index
      %c0_119 = arith.constant 0 : index
      %c0_120 = arith.constant 0 : index
      %199 = vector.load %arg12[%c0_118, %c0_119, %c0_120] : memref<2x8x32xf32, #tpu.memory_space<vmem>>, vector<2x8x32xf32>
      tpu.vector_store %arg12[%c0_118, %c0_119, %c0_120], %198 {strides = array<i32>} : memref<2x8x32xf32, #tpu.memory_space<vmem>>, vector<2x8x32xf32>,
    } else {
    }
    %c0 = arith.constant 0 : index
    %c0_1 = arith.constant 0 : index
    %3 = vector.load %arg1[%c0, %c0_1] : memref<64x32xbf16, #tpu.memory_space<vmem>>, vector<64x32xbf16>
    %c0_2 = arith.constant 0 : index
    %c0_3 = arith.constant 0 : index
    %4 = vector.load %arg3[%c0_2, %c0_3] : memref<32x32xbf16, #tpu.memory_space<vmem>>, vector<32x32xbf16>
    %cst = arith.constant dense<0.000000e+00> : vector<64x32xf32>
    %5 = tpu.matmul %3, %4, %cst {dimension_numbers = #tpu.dot_dimension_numbers<[1], [0], [0], [1], [0, 0, 1, 1], [], []>} : vector<64x32xbf16>, vector<32x32xbf16>, vector<64x32xf32> -> vector<64x32xf32>
    %c0_4 = arith.constant 0 : index
    %c0_5 = arith.constant 0 : index
    %6 = vector.load %arg7[%c0_4, %c0_5] : memref<1x32xf32, #tpu.memory_space<vmem>>, vector<1x32xf32>
    %7 = vector.broadcast %6 : vector<1x32xf32> to vector<64x32xf32>
    %8 = arith.addf %5, %7 : vector<64x32xf32>
    %c0_6 = arith.constant 0 : index
    %c0_7 = arith.constant 0 : index
    %9 = vector.load %arg13[%c0_6, %c0_7] : memref<64x32xf32, #tpu.memory_space<vmem>>, vector<64x32xf32>
    tpu.vector_store %arg13[%c0_6, %c0_7], %8 {strides = array<i32>} : memref<64x32xf32, #tpu.memory_space<vmem>>, vector<64x32xf32>,
    %c0_8 = arith.constant 0 : index
    %c0_9 = arith.constant 0 : index
    %10 = vector.load %arg5[%c0_8, %c0_9] : memref<32x32xbf16, #tpu.memory_space<vmem>>, vector<32x32xbf16>
    %c0_10 = arith.constant 0 : index
    %c0_11 = arith.constant 0 : index
    %c0_12 = arith.constant 0 : index
    %11 = vector.load %arg12[%c0_10, %c0_11, %c0_12] : memref<2x8x32xf32, #tpu.memory_space<vmem>>, vector<1x8x32xf32>
    %12 = vector.shape_cast %11 : vector<1x8x32xf32> to vector<8x32xf32>
    %c0_i32_13 = arith.constant 0 : i32
    %c8_i32 = arith.constant 8 : i32
    %13 = arith.muli %c0_i32_13, %c8_i32 : i32
    %14 = tpu.assume_multiple %13, 8 : i32
    %15 = arith.index_cast %14 : i32 to index
    %c0_14 = arith.constant 0 : index
    %16 = vector.load %arg13[%15, %c0_14] : memref<64x32xf32, #tpu.memory_space<vmem>>, vector<8x32xf32>
    %17 = arith.truncf %12 : vector<8x32xf32> to vector<8x32xbf16>
    %cst_15 = arith.constant dense<0.000000e+00> : vector<8x32xf32>
    %18 = tpu.matmul %17, %10, %cst_15 {dimension_numbers = #tpu.dot_dimension_numbers<[1], [0], [0], [1], [0, 0, 1, 1], [], []>} : vector<8x32xbf16>, vector<32x32xbf16>, vector<8x32xf32> -> vector<8x32xf32>
    %19 = arith.addf %16, %18 : vector<8x32xf32>
    %20 = math.tanh %19 : vector<8x32xf32>
    %21 = arith.index_cast %14 : i32 to index
    %c0_16 = arith.constant 0 : index
    %22 = vector.load %arg14[%21, %c0_16] : memref<64x32xf32, #tpu.memory_space<vmem>>, vector<8x32xf32>
    tpu.vector_store %arg14[%21, %c0_16], %20 {strides = array<i32>} : memref<64x32xf32, #tpu.memory_space<vmem>>, vector<8x32xf32>,
    %c1_i32 = arith.constant 1 : i32
    %c8_i32_17 = arith.constant 8 : i32
    %23 = arith.muli %c1_i32, %c8_i32_17 : i32
    %24 = tpu.assume_multiple %23, 8 : i32
    %25 = arith.index_cast %24 : i32 to index
    %c0_18 = arith.constant 0 : index
    %26 = vector.load %arg13[%25, %c0_18] : memref<64x32xf32, #tpu.memory_space<vmem>>, vector<8x32xf32>
    %27 = arith.truncf %20 : vector<8x32xf32> to vector<8x32xbf16>
    %cst_19 = arith.constant dense<0.000000e+00> : vector<8x32xf32>
    %28 = tpu.matmul %27, %10, %cst_19 {dimension_numbers = #tpu.dot_dimension_numbers<[1], [0], [0], [1], [0, 0, 1, 1], [], []>} : vector<8x32xbf16>, vector<32x32xbf16>, vector<8x32xf32> -> vector<8x32xf32>
    %29 = arith.addf %26, %28 : vector<8x32xf32>
    %30 = math.tanh %29 : vector<8x32xf32>
    %31 = arith.index_cast %24 : i32 to index
    %c0_20 = arith.constant 0 : index
    %32 = vector.load %arg14[%31, %c0_20] : memref<64x32xf32, #tpu.memory_space<vmem>>, vector<8x32xf32>
    tpu.vector_store %arg14[%31, %c0_20], %30 {strides = array<i32>} : memref<64x32xf32, #tpu.memory_space<vmem>>, vector<8x32xf32>,
    %c2_i32 = arith.constant 2 : i32
    %c8_i32_21 = arith.constant 8 : i32
    %33 = arith.muli %c2_i32, %c8_i32_21 : i32
    %34 = tpu.assume_multiple %33, 8 : i32
    %35 = arith.index_cast %34 : i32 to index
    %c0_22 = arith.constant 0 : index
    %36 = vector.load %arg13[%35, %c0_22] : memref<64x32xf32, #tpu.memory_space<vmem>>, vector<8x32xf32>
    %37 = arith.truncf %30 : vector<8x32xf32> to vector<8x32xbf16>
    %cst_23 = arith.constant dense<0.000000e+00> : vector<8x32xf32>
    %38 = tpu.matmul %37, %10, %cst_23 {dimension_numbers = #tpu.dot_dimension_numbers<[1], [0], [0], [1], [0, 0, 1, 1], [], []>} : vector<8x32xbf16>, vector<32x32xbf16>, vector<8x32xf32> -> vector<8x32xf32>
    %39 = arith.addf %36, %38 : vector<8x32xf32>
    %40 = math.tanh %39 : vector<8x32xf32>
    %41 = arith.index_cast %34 : i32 to index
    %c0_24 = arith.constant 0 : index
    %42 = vector.load %arg14[%41, %c0_24] : memref<64x32xf32, #tpu.memory_space<vmem>>, vector<8x32xf32>
    tpu.vector_store %arg14[%41, %c0_24], %40 {strides = array<i32>} : memref<64x32xf32, #tpu.memory_space<vmem>>, vector<8x32xf32>,
    %c3_i32 = arith.constant 3 : i32
    %c8_i32_25 = arith.constant 8 : i32
    %43 = arith.muli %c3_i32, %c8_i32_25 : i32
    %44 = tpu.assume_multiple %43, 8 : i32
    %45 = arith.index_cast %44 : i32 to index
    %c0_26 = arith.constant 0 : index
    %46 = vector.load %arg13[%45, %c0_26] : memref<64x32xf32, #tpu.memory_space<vmem>>, vector<8x32xf32>
    %47 = arith.truncf %40 : vector<8x32xf32> to vector<8x32xbf16>
    %cst_27 = arith.constant dense<0.000000e+00> : vector<8x32xf32>
    %48 = tpu.matmul %47, %10, %cst_27 {dimension_numbers = #tpu.dot_dimension_numbers<[1], [0], [0], [1], [0, 0, 1, 1], [], []>} : vector<8x32xbf16>, vector<32x32xbf16>, vector<8x32xf32> -> vector<8x32xf32>
    %49 = arith.addf %46, %48 : vector<8x32xf32>
    %50 = math.tanh %49 : vector<8x32xf32>
    %51 = arith.index_cast %44 : i32 to index
    %c0_28 = arith.constant 0 : index
    %52 = vector.load %arg14[%51, %c0_28] : memref<64x32xf32, #tpu.memory_space<vmem>>, vector<8x32xf32>
    tpu.vector_store %arg14[%51, %c0_28], %50 {strides = array<i32>} : memref<64x32xf32, #tpu.memory_space<vmem>>, vector<8x32xf32>,
    %c4_i32 = arith.constant 4 : i32
    %c8_i32_29 = arith.constant 8 : i32
    %53 = arith.muli %c4_i32, %c8_i32_29 : i32
    %54 = tpu.assume_multiple %53, 8 : i32
    %55 = arith.index_cast %54 : i32 to index
    %c0_30 = arith.constant 0 : index
    %56 = vector.load %arg13[%55, %c0_30] : memref<64x32xf32, #tpu.memory_space<vmem>>, vector<8x32xf32>
    %57 = arith.truncf %50 : vector<8x32xf32> to vector<8x32xbf16>
    %cst_31 = arith.constant dense<0.000000e+00> : vector<8x32xf32>
    %58 = tpu.matmul %57, %10, %cst_31 {dimension_numbers = #tpu.dot_dimension_numbers<[1], [0], [0], [1], [0, 0, 1, 1], [], []>} : vector<8x32xbf16>, vector<32x32xbf16>, vector<8x32xf32> -> vector<8x32xf32>
    %59 = arith.addf %56, %58 : vector<8x32xf32>
    %60 = math.tanh %59 : vector<8x32xf32>
    %61 = arith.index_cast %54 : i32 to index
    %c0_32 = arith.constant 0 : index
    %62 = vector.load %arg14[%61, %c0_32] : memref<64x32xf32, #tpu.memory_space<vmem>>, vector<8x32xf32>
    tpu.vector_store %arg14[%61, %c0_32], %60 {strides = array<i32>} : memref<64x32xf32, #tpu.memory_space<vmem>>, vector<8x32xf32>,
    %c5_i32 = arith.constant 5 : i32
    %c8_i32_33 = arith.constant 8 : i32
    %63 = arith.muli %c5_i32, %c8_i32_33 : i32
    %64 = tpu.assume_multiple %63, 8 : i32
    %65 = arith.index_cast %64 : i32 to index
    %c0_34 = arith.constant 0 : index
    %66 = vector.load %arg13[%65, %c0_34] : memref<64x32xf32, #tpu.memory_space<vmem>>, vector<8x32xf32>
    %67 = arith.truncf %60 : vector<8x32xf32> to vector<8x32xbf16>
    %cst_35 = arith.constant dense<0.000000e+00> : vector<8x32xf32>
    %68 = tpu.matmul %67, %10, %cst_35 {dimension_numbers = #tpu.dot_dimension_numbers<[1], [0], [0], [1], [0, 0, 1, 1], [], []>} : vector<8x32xbf16>, vector<32x32xbf16>, vector<8x32xf32> -> vector<8x32xf32>
    %69 = arith.addf %66, %68 : vector<8x32xf32>
    %70 = math.tanh %69 : vector<8x32xf32>
    %71 = arith.index_cast %64 : i32 to index
    %c0_36 = arith.constant 0 : index
    %72 = vector.load %arg14[%71, %c0_36] : memref<64x32xf32, #tpu.memory_space<vmem>>, vector<8x32xf32>
    tpu.vector_store %arg14[%71, %c0_36], %70 {strides = array<i32>} : memref<64x32xf32, #tpu.memory_space<vmem>>, vector<8x32xf32>,
    %c6_i32 = arith.constant 6 : i32
    %c8_i32_37 = arith.constant 8 : i32
    %73 = arith.muli %c6_i32, %c8_i32_37 : i32
    %74 = tpu.assume_multiple %73, 8 : i32
    %75 = arith.index_cast %74 : i32 to index
    %c0_38 = arith.constant 0 : index
    %76 = vector.load %arg13[%75, %c0_38] : memref<64x32xf32, #tpu.memory_space<vmem>>, vector<8x32xf32>
    %77 = arith.truncf %70 : vector<8x32xf32> to vector<8x32xbf16>
    %cst_39 = arith.constant dense<0.000000e+00> : vector<8x32xf32>
    %78 = tpu.matmul %77, %10, %cst_39 {dimension_numbers = #tpu.dot_dimension_numbers<[1], [0], [0], [1], [0, 0, 1, 1], [], []>} : vector<8x32xbf16>, vector<32x32xbf16>, vector<8x32xf32> -> vector<8x32xf32>
    %79 = arith.addf %76, %78 : vector<8x32xf32>
    %80 = math.tanh %79 : vector<8x32xf32>
    %81 = arith.index_cast %74 : i32 to index
    %c0_40 = arith.constant 0 : index
    %82 = vector.load %arg14[%81, %c0_40] : memref<64x32xf32, #tpu.memory_space<vmem>>, vector<8x32xf32>
    tpu.vector_store %arg14[%81, %c0_40], %80 {strides = array<i32>} : memref<64x32xf32, #tpu.memory_space<vmem>>, vector<8x32xf32>,
    %c7_i32 = arith.constant 7 : i32
    %c8_i32_41 = arith.constant 8 : i32
    %83 = arith.muli %c7_i32, %c8_i32_41 : i32
    %84 = tpu.assume_multiple %83, 8 : i32
    %85 = arith.index_cast %84 : i32 to index
    %c0_42 = arith.constant 0 : index
    %86 = vector.load %arg13[%85, %c0_42] : memref<64x32xf32, #tpu.memory_space<vmem>>, vector<8x32xf32>
    %87 = arith.truncf %80 : vector<8x32xf32> to vector<8x32xbf16>
    %cst_43 = arith.constant dense<0.000000e+00> : vector<8x32xf32>
    %88 = tpu.matmul %87, %10, %cst_43 {dimension_numbers = #tpu.dot_dimension_numbers<[1], [0], [0], [1], [0, 0, 1, 1], [], []>} : vector<8x32xbf16>, vector<32x32xbf16>, vector<8x32xf32> -> vector<8x32xf32>
    %89 = arith.addf %86, %88 : vector<8x32xf32>
    %90 = math.tanh %89 : vector<8x32xf32>
    %91 = arith.index_cast %84 : i32 to index
    %c0_44 = arith.constant 0 : index
    %92 = vector.load %arg14[%91, %c0_44] : memref<64x32xf32, #tpu.memory_space<vmem>>, vector<8x32xf32>
    tpu.vector_store %arg14[%91, %c0_44], %90 {strides = array<i32>} : memref<64x32xf32, #tpu.memory_space<vmem>>, vector<8x32xf32>,
    %c8_i32_45 = arith.constant 8 : i32
    %c0_46 = arith.constant 0 : index
    %c0_47 = arith.constant 0 : index
    %c0_48 = arith.constant 0 : index
    %93 = vector.load %arg12[%c0_46, %c0_47, %c0_48] : memref<2x8x32xf32, #tpu.memory_space<vmem>>, vector<1x8x32xf32>
    %94 = vector.shape_cast %93 : vector<1x8x32xf32> to vector<8x32xf32>
    %95 = vector.shape_cast %90 : vector<8x32xf32> to vector<1x8x32xf32>
    tpu.vector_store %arg12[%c0_46, %c0_47, %c0_48], %95 {strides = array<i32>} : memref<2x8x32xf32, #tpu.memory_space<vmem>>, vector<1x8x32xf32>,
    %c0_49 = arith.constant 0 : index
    %c0_50 = arith.constant 0 : index
    %96 = vector.load %arg14[%c0_49, %c0_50] : memref<64x32xf32, #tpu.memory_space<vmem>>, vector<64x32xf32>
    %97 = arith.truncf %96 : vector<64x32xf32> to vector<64x32xbf16>
    %c0_51 = arith.constant 0 : index
    %c0_52 = arith.constant 0 : index
    %98 = vector.load %arg4[%c0_51, %c0_52] : memref<32x32xbf16, #tpu.memory_space<vmem>>, vector<32x32xbf16>
    %cst_53 = arith.constant dense<0.000000e+00> : vector<64x32xf32>
    %99 = tpu.matmul %97, %98, %cst_53 {dimension_numbers = #tpu.dot_dimension_numbers<[1], [0], [0], [1], [0, 0, 1, 1], [], []>} : vector<64x32xbf16>, vector<32x32xbf16>, vector<64x32xf32> -> vector<64x32xf32>
    %c0_54 = arith.constant 0 : index
    %c0_55 = arith.constant 0 : index
    %100 = vector.load %arg8[%c0_54, %c0_55] : memref<1x32xf32, #tpu.memory_space<vmem>>, vector<1x32xf32>
    %101 = vector.broadcast %100 : vector<1x32xf32> to vector<64x32xf32>
    %102 = arith.addf %99, %101 : vector<64x32xf32>
    %c0_56 = arith.constant 0 : index
    %c0_57 = arith.constant 0 : index
    %103 = vector.load %arg13[%c0_56, %c0_57] : memref<64x32xf32, #tpu.memory_space<vmem>>, vector<64x32xf32>
    tpu.vector_store %arg13[%c0_56, %c0_57], %102 {strides = array<i32>} : memref<64x32xf32, #tpu.memory_space<vmem>>, vector<64x32xf32>,
    %c0_58 = arith.constant 0 : index
    %c0_59 = arith.constant 0 : index
    %104 = vector.load %arg6[%c0_58, %c0_59] : memref<32x32xbf16, #tpu.memory_space<vmem>>, vector<32x32xbf16>
    %c1 = arith.constant 1 : index
    %c0_60 = arith.constant 0 : index
    %c0_61 = arith.constant 0 : index
    %105 = vector.load %arg12[%c1, %c0_60, %c0_61] : memref<2x8x32xf32, #tpu.memory_space<vmem>>, vector<1x8x32xf32>
    %106 = vector.shape_cast %105 : vector<1x8x32xf32> to vector<8x32xf32>
    %c0_i32_62 = arith.constant 0 : i32
    %c8_i32_63 = arith.constant 8 : i32
    %107 = arith.muli %c0_i32_62, %c8_i32_63 : i32
    %108 = tpu.assume_multiple %107, 8 : i32
    %109 = arith.index_cast %108 : i32 to index
    %c0_64 = arith.constant 0 : index
    %110 = vector.load %arg13[%109, %c0_64] : memref<64x32xf32, #tpu.memory_space<vmem>>, vector<8x32xf32>
    %111 = arith.truncf %106 : vector<8x32xf32> to vector<8x32xbf16>
    %cst_65 = arith.constant dense<0.000000e+00> : vector<8x32xf32>
    %112 = tpu.matmul %111, %104, %cst_65 {dimension_numbers = #tpu.dot_dimension_numbers<[1], [0], [0], [1], [0, 0, 1, 1], [], []>} : vector<8x32xbf16>, vector<32x32xbf16>, vector<8x32xf32> -> vector<8x32xf32>
    %113 = arith.addf %110, %112 : vector<8x32xf32>
    %114 = math.tanh %113 : vector<8x32xf32>
    %115 = arith.index_cast %108 : i32 to index
    %c0_66 = arith.constant 0 : index
    %116 = vector.load %arg14[%115, %c0_66] : memref<64x32xf32, #tpu.memory_space<vmem>>, vector<8x32xf32>
    tpu.vector_store %arg14[%115, %c0_66], %114 {strides = array<i32>} : memref<64x32xf32, #tpu.memory_space<vmem>>, vector<8x32xf32>,
    %c1_i32_67 = arith.constant 1 : i32
    %c8_i32_68 = arith.constant 8 : i32
    %117 = arith.muli %c1_i32_67, %c8_i32_68 : i32
    %118 = tpu.assume_multiple %117, 8 : i32
    %119 = arith.index_cast %118 : i32 to index
    %c0_69 = arith.constant 0 : index
    %120 = vector.load %arg13[%119, %c0_69] : memref<64x32xf32, #tpu.memory_space<vmem>>, vector<8x32xf32>
    %121 = arith.truncf %114 : vector<8x32xf32> to vector<8x32xbf16>
    %cst_70 = arith.constant dense<0.000000e+00> : vector<8x32xf32>
    %122 = tpu.matmul %121, %104, %cst_70 {dimension_numbers = #tpu.dot_dimension_numbers<[1], [0], [0], [1], [0, 0, 1, 1], [], []>} : vector<8x32xbf16>, vector<32x32xbf16>, vector<8x32xf32> -> vector<8x32xf32>
    %123 = arith.addf %120, %122 : vector<8x32xf32>
    %124 = math.tanh %123 : vector<8x32xf32>
    %125 = arith.index_cast %118 : i32 to index
    %c0_71 = arith.constant 0 : index
    %126 = vector.load %arg14[%125, %c0_71] : memref<64x32xf32, #tpu.memory_space<vmem>>, vector<8x32xf32>
    tpu.vector_store %arg14[%125, %c0_71], %124 {strides = array<i32>} : memref<64x32xf32, #tpu.memory_space<vmem>>, vector<8x32xf32>,
    %c2_i32_72 = arith.constant 2 : i32
    %c8_i32_73 = arith.constant 8 : i32
    %127 = arith.muli %c2_i32_72, %c8_i32_73 : i32
    %128 = tpu.assume_multiple %127, 8 : i32
    %129 = arith.index_cast %128 : i32 to index
    %c0_74 = arith.constant 0 : index
    %130 = vector.load %arg13[%129, %c0_74] : memref<64x32xf32, #tpu.memory_space<vmem>>, vector<8x32xf32>
    %131 = arith.truncf %124 : vector<8x32xf32> to vector<8x32xbf16>
    %cst_75 = arith.constant dense<0.000000e+00> : vector<8x32xf32>
    %132 = tpu.matmul %131, %104, %cst_75 {dimension_numbers = #tpu.dot_dimension_numbers<[1], [0], [0], [1], [0, 0, 1, 1], [], []>} : vector<8x32xbf16>, vector<32x32xbf16>, vector<8x32xf32> -> vector<8x32xf32>
    %133 = arith.addf %130, %132 : vector<8x32xf32>
    %134 = math.tanh %133 : vector<8x32xf32>
    %135 = arith.index_cast %128 : i32 to index
    %c0_76 = arith.constant 0 : index
    %136 = vector.load %arg14[%135, %c0_76] : memref<64x32xf32, #tpu.memory_space<vmem>>, vector<8x32xf32>
    tpu.vector_store %arg14[%135, %c0_76], %134 {strides = array<i32>} : memref<64x32xf32, #tpu.memory_space<vmem>>, vector<8x32xf32>,
    %c3_i32_77 = arith.constant 3 : i32
    %c8_i32_78 = arith.constant 8 : i32
    %137 = arith.muli %c3_i32_77, %c8_i32_78 : i32
    %138 = tpu.assume_multiple %137, 8 : i32
    %139 = arith.index_cast %138 : i32 to index
    %c0_79 = arith.constant 0 : index
    %140 = vector.load %arg13[%139, %c0_79] : memref<64x32xf32, #tpu.memory_space<vmem>>, vector<8x32xf32>
    %141 = arith.truncf %134 : vector<8x32xf32> to vector<8x32xbf16>
    %cst_80 = arith.constant dense<0.000000e+00> : vector<8x32xf32>
    %142 = tpu.matmul %141, %104, %cst_80 {dimension_numbers = #tpu.dot_dimension_numbers<[1], [0], [0], [1], [0, 0, 1, 1], [], []>} : vector<8x32xbf16>, vector<32x32xbf16>, vector<8x32xf32> -> vector<8x32xf32>
    %143 = arith.addf %140, %142 : vector<8x32xf32>
    %144 = math.tanh %143 : vector<8x32xf32>
    %145 = arith.index_cast %138 : i32 to index
    %c0_81 = arith.constant 0 : index
    %146 = vector.load %arg14[%145, %c0_81] : memref<64x32xf32, #tpu.memory_space<vmem>>, vector<8x32xf32>
    tpu.vector_store %arg14[%145, %c0_81], %144 {strides = array<i32>} : memref<64x32xf32, #tpu.memory_space<vmem>>, vector<8x32xf32>,
    %c4_i32_82 = arith.constant 4 : i32
    %c8_i32_83 = arith.constant 8 : i32
    %147 = arith.muli %c4_i32_82, %c8_i32_83 : i32
    %148 = tpu.assume_multiple %147, 8 : i32
    %149 = arith.index_cast %148 : i32 to index
    %c0_84 = arith.constant 0 : index
    %150 = vector.load %arg13[%149, %c0_84] : memref<64x32xf32, #tpu.memory_space<vmem>>, vector<8x32xf32>
    %151 = arith.truncf %144 : vector<8x32xf32> to vector<8x32xbf16>
    %cst_85 = arith.constant dense<0.000000e+00> : vector<8x32xf32>
    %152 = tpu.matmul %151, %104, %cst_85 {dimension_numbers = #tpu.dot_dimension_numbers<[1], [0], [0], [1], [0, 0, 1, 1], [], []>} : vector<8x32xbf16>, vector<32x32xbf16>, vector<8x32xf32> -> vector<8x32xf32>
    %153 = arith.addf %150, %152 : vector<8x32xf32>
    %154 = math.tanh %153 : vector<8x32xf32>
    %155 = arith.index_cast %148 : i32 to index
    %c0_86 = arith.constant 0 : index
    %156 = vector.load %arg14[%155, %c0_86] : memref<64x32xf32, #tpu.memory_space<vmem>>, vector<8x32xf32>
    tpu.vector_store %arg14[%155, %c0_86], %154 {strides = array<i32>} : memref<64x32xf32, #tpu.memory_space<vmem>>, vector<8x32xf32>,
    %c5_i32_87 = arith.constant 5 : i32
    %c8_i32_88 = arith.constant 8 : i32
    %157 = arith.muli %c5_i32_87, %c8_i32_88 : i32
    %158 = tpu.assume_multiple %157, 8 : i32
    %159 = arith.index_cast %158 : i32 to index
    %c0_89 = arith.constant 0 : index
    %160 = vector.load %arg13[%159, %c0_89] : memref<64x32xf32, #tpu.memory_space<vmem>>, vector<8x32xf32>
    %161 = arith.truncf %154 : vector<8x32xf32> to vector<8x32xbf16>
    %cst_90 = arith.constant dense<0.000000e+00> : vector<8x32xf32>
    %162 = tpu.matmul %161, %104, %cst_90 {dimension_numbers = #tpu.dot_dimension_numbers<[1], [0], [0], [1], [0, 0, 1, 1], [], []>} : vector<8x32xbf16>, vector<32x32xbf16>, vector<8x32xf32> -> vector<8x32xf32>
    %163 = arith.addf %160, %162 : vector<8x32xf32>
    %164 = math.tanh %163 : vector<8x32xf32>
    %165 = arith.index_cast %158 : i32 to index
    %c0_91 = arith.constant 0 : index
    %166 = vector.load %arg14[%165, %c0_91] : memref<64x32xf32, #tpu.memory_space<vmem>>, vector<8x32xf32>
    tpu.vector_store %arg14[%165, %c0_91], %164 {strides = array<i32>} : memref<64x32xf32, #tpu.memory_space<vmem>>, vector<8x32xf32>,
    %c6_i32_92 = arith.constant 6 : i32
    %c8_i32_93 = arith.constant 8 : i32
    %167 = arith.muli %c6_i32_92, %c8_i32_93 : i32
    %168 = tpu.assume_multiple %167, 8 : i32
    %169 = arith.index_cast %168 : i32 to index
    %c0_94 = arith.constant 0 : index
    %170 = vector.load %arg13[%169, %c0_94] : memref<64x32xf32, #tpu.memory_space<vmem>>, vector<8x32xf32>
    %171 = arith.truncf %164 : vector<8x32xf32> to vector<8x32xbf16>
    %cst_95 = arith.constant dense<0.000000e+00> : vector<8x32xf32>
    %172 = tpu.matmul %171, %104, %cst_95 {dimension_numbers = #tpu.dot_dimension_numbers<[1], [0], [0], [1], [0, 0, 1, 1], [], []>} : vector<8x32xbf16>, vector<32x32xbf16>, vector<8x32xf32> -> vector<8x32xf32>
    %173 = arith.addf %170, %172 : vector<8x32xf32>
    %174 = math.tanh %173 : vector<8x32xf32>
    %175 = arith.index_cast %168 : i32 to index
    %c0_96 = arith.constant 0 : index
    %176 = vector.load %arg14[%175, %c0_96] : memref<64x32xf32, #tpu.memory_space<vmem>>, vector<8x32xf32>
    tpu.vector_store %arg14[%175, %c0_96], %174 {strides = array<i32>} : memref<64x32xf32, #tpu.memory_space<vmem>>, vector<8x32xf32>,
    %c7_i32_97 = arith.constant 7 : i32
    %c8_i32_98 = arith.constant 8 : i32
    %177 = arith.muli %c7_i32_97, %c8_i32_98 : i32
    %178 = tpu.assume_multiple %177, 8 : i32
    %179 = arith.index_cast %178 : i32 to index
    %c0_99 = arith.constant 0 : index
    %180 = vector.load %arg13[%179, %c0_99] : memref<64x32xf32, #tpu.memory_space<vmem>>, vector<8x32xf32>
    %181 = arith.truncf %174 : vector<8x32xf32> to vector<8x32xbf16>
    %cst_100 = arith.constant dense<0.000000e+00> : vector<8x32xf32>
    %182 = tpu.matmul %181, %104, %cst_100 {dimension_numbers = #tpu.dot_dimension_numbers<[1], [0], [0], [1], [0, 0, 1, 1], [], []>} : vector<8x32xbf16>, vector<32x32xbf16>, vector<8x32xf32> -> vector<8x32xf32>
    %183 = arith.addf %180, %182 : vector<8x32xf32>
    %184 = math.tanh %183 : vector<8x32xf32>
    %185 = arith.index_cast %178 : i32 to index
    %c0_101 = arith.constant 0 : index
    %186 = vector.load %arg14[%185, %c0_101] : memref<64x32xf32, #tpu.memory_space<vmem>>, vector<8x32xf32>
    tpu.vector_store %arg14[%185, %c0_101], %184 {strides = array<i32>} : memref<64x32xf32, #tpu.memory_space<vmem>>, vector<8x32xf32>,
    %c8_i32_102 = arith.constant 8 : i32
    %c1_103 = arith.constant 1 : index
    %c0_104 = arith.constant 0 : index
    %c0_105 = arith.constant 0 : index
    %187 = vector.load %arg12[%c1_103, %c0_104, %c0_105] : memref<2x8x32xf32, #tpu.memory_space<vmem>>, vector<1x8x32xf32>
    %188 = vector.shape_cast %187 : vector<1x8x32xf32> to vector<8x32xf32>
    %189 = vector.shape_cast %184 : vector<8x32xf32> to vector<1x8x32xf32>
    tpu.vector_store %arg12[%c1_103, %c0_104, %c0_105], %189 {strides = array<i32>} : memref<2x8x32xf32, #tpu.memory_space<vmem>>, vector<1x8x32xf32>,
    %c0_106 = arith.constant 0 : index
    %c0_107 = arith.constant 0 : index
    %190 = vector.load %arg14[%c0_106, %c0_107] : memref<64x32xf32, #tpu.memory_space<vmem>>, vector<64x32xf32>
    %191 = arith.truncf %190 : vector<64x32xf32> to vector<64x32xbf16>
    %c0_108 = arith.constant 0 : index
    %c0_109 = arith.constant 0 : index
    %192 = vector.load %arg9[%c0_108, %c0_109] : memref<32x16xbf16, #tpu.memory_space<vmem>>, vector<32x16xbf16>
    %cst_110 = arith.constant dense<0.000000e+00> : vector<64x16xf32>
    %193 = tpu.matmul %191, %192, %cst_110 {dimension_numbers = #tpu.dot_dimension_numbers<[1], [0], [0], [1], [0, 0, 1, 1], [], []>} : vector<64x32xbf16>, vector<32x16xbf16>, vector<64x16xf32> -> vector<64x16xf32>
    %c0_111 = arith.constant 0 : index
    %c0_112 = arith.constant 0 : index
    %194 = vector.load %arg10[%c0_111, %c0_112] : memref<1x16xf32, #tpu.memory_space<vmem>>, vector<1x16xf32>
    %195 = vector.broadcast %194 : vector<1x16xf32> to vector<64x16xf32>
    %196 = arith.addf %193, %195 : vector<64x16xf32>
    %c0_113 = arith.constant 0 : index
    %c0_114 = arith.constant 0 : index
    %197 = vector.load %arg11[%c0_113, %c0_114] : memref<64x16xf32, #tpu.memory_space<vmem>>, vector<64x16xf32>
    tpu.vector_store %arg11[%c0_113, %c0_114], %196 {strides = array<i32>} : memref<64x16xf32, #tpu.memory_space<vmem>>, vector<64x16xf32>,
    return
  }
  func.func @transform_0(%arg0: i32) -> (i32, i32) {
    %c0_i32 = arith.constant 0 : i32
    %c0_i32_0 = arith.constant 0 : i32
    return %arg0, %c0_i32 : i32, i32
  }
  func.func @transform_1(%arg0: i32) -> (i32, i32, i32) {
    %c0_i32 = arith.constant 0 : i32
    %c0_i32_0 = arith.constant 0 : i32
    %c0_i32_1 = arith.constant 0 : i32
    %c0_i32_2 = arith.constant 0 : i32
    return %c0_i32, %c0_i32_0, %c0_i32_1 : i32, i32, i32
  }
  func.func @transform_2(%arg0: i32) -> (i32, i32) {
    %c0_i32 = arith.constant 0 : i32
    %c0_i32_0 = arith.constant 0 : i32
    %c0_i32_1 = arith.constant 0 : i32
    return %c0_i32, %c0_i32_0 : i32, i32
  }
  func.func @transform_3(%arg0: i32) -> (i32, i32) {
    %c0_i32 = arith.constant 0 : i32
    %c0_i32_0 = arith.constant 0 : i32
    %c0_i32_1 = arith.constant 0 : i32
    return %c0_i32, %c0_i32_0 : i32, i32
  }
  func.func @transform_4(%arg0: i32) -> (i32, i32) {
    %c0_i32 = arith.constant 0 : i32
    %c0_i32_0 = arith.constant 0 : i32
    %c0_i32_1 = arith.constant 0 : i32
    return %c0_i32, %c0_i32_0 : i32, i32
  }
  func.func @transform_5(%arg0: i32) -> (i32, i32) {
    %c0_i32 = arith.constant 0 : i32
    %c0_i32_0 = arith.constant 0 : i32
    %c0_i32_1 = arith.constant 0 : i32
    return %c0_i32, %c0_i32_0 : i32, i32
  }
  func.func @transform_6(%arg0: i32) -> (i32, i32) {
    %c0_i32 = arith.constant 0 : i32
    %c0_i32_0 = arith.constant 0 : i32
    %c0_i32_1 = arith.constant 0 : i32
    return %c0_i32, %c0_i32_0 : i32, i32
  }
  func.func @transform_7(%arg0: i32) -> (i32, i32) {
    %c0_i32 = arith.constant 0 : i32
    %c0_i32_0 = arith.constant 0 : i32
    %c0_i32_1 = arith.constant 0 : i32
    return %c0_i32, %c0_i32_0 : i32, i32
  }
  func.func @transform_8(%arg0: i32) -> (i32, i32) {
    %c0_i32 = arith.constant 0 : i32
    %c0_i32_0 = arith.constant 0 : i32
    %c0_i32_1 = arith.constant 0 : i32
    return %c0_i32, %c0_i32_0 : i32, i32
  }
  func.func @transform_9(%arg0: i32) -> (i32, i32) {
    %c0_i32 = arith.constant 0 : i32
    %c0_i32_0 = arith.constant 0 : i32
    %c0_i32_1 = arith.constant 0 : i32
    return %c0_i32, %c0_i32_0 : i32, i32
  }
  func.func @transform_10(%arg0: i32) -> (i32, i32) {
    %c0_i32 = arith.constant 0 : i32
    %c0_i32_0 = arith.constant 0 : i32
    return %arg0, %c0_i32 : i32, i32
  }
}

</mosaic_0001>

<llo_original>
// kernel: tpu_custom_call.1
$region0: #{tpu_custom_call.1}
  #allocation0 [shape = 'u32[]', space=smem, size = 0x4, offset = 0x4, fixed_abs, tag = 'smem constant byte address 0x4 - core index']
  #allocation1 [shape = 'u32[144,128]{1,0:T(1,128)}', space=vmem, size = 0x12000, scoped, tag = 'internal scratch']
  #allocation2 [shape = 'f32[2,8,32]{2,1,0:T(8,128)}', space=vmem, size = 0x2000, scoped, tag = 'scratch operand']
  #allocation3 [shape = 'f32[64,32]{1,0:T(8,128)}', space=vmem, size = 0x8000, scoped, tag = 'scratch operand']
  #allocation4 [shape = 'f32[64,32]{1,0:T(8,128)}', space=vmem, size = 0x8000, scoped, tag = 'scratch operand']
  %s0 = inlined_call_operand.vmem [shape: bf16[64,32], index: 0, kind: input, shape index: {}]
  %s1 = inlined_call_operand.vmem [shape: f32[2,8,32], index: 1, kind: input, shape index: {}]
  %s2 = inlined_call_operand.vmem [shape: bf16[32,32], index: 2, kind: input, shape index: {}]
  %s3 = inlined_call_operand.vmem [shape: bf16[32,32], index: 3, kind: input, shape index: {}]
  %s4 = inlined_call_operand.vmem [shape: bf16[32,32], index: 4, kind: input, shape index: {}]
  %s5 = inlined_call_operand.hbm [shape: bf16[32,32], index: 5, kind: input, shape index: {}]
  %s6 = inlined_call_operand.vmem [shape: f32[1,32], index: 6, kind: input, shape index: {}]
  %s7 = inlined_call_operand.vmem [shape: f32[1,32], index: 7, kind: input, shape index: {}]
  %s8 = inlined_call_operand.vmem [shape: bf16[32,16], index: 8, kind: input, shape index: {}]
  %s9 = inlined_call_operand.vmem [shape: f32[1,16], index: 9, kind: input, shape index: {}]
  %s10 = inlined_call_operand.vmem [shape: f32[64,16], index: 10, kind: output, shape index: {}]
  %s11 = sld [smem:[#allocation0]]
  $region58: #{tpu_custom_call.1} parent=0
    _
  %s13 = ssub.s32 1, %s11
  %s14 = scalar_select 0, %s13, %s11
  $region1: #{tpu_custom_call.1} parent=0
    #allocation5 [shape = 'u8[8192]{0}', space=vmem, size = 0x2000, scoped, tag = 'input window, operand 5, single buffered']
    #allocation6 [shape = 's32[1]{0}', space=sflag, size = 0x4, scoped, tag = 'scoped memory for tpu_custom_call.1']
    %15 = vsyncpa [#allocation6], 0
    // Predicated region
    $region2: #{tpu_custom_call.1} parent=1 // pred_check
      _
    $region3: #{tpu_custom_call.1} parent=1 // pred_check_branch
      %17 = sbr.rel (0) target = $region5
    $region4: #{tpu_custom_call.1} parent=1 // pred_region
      _
    $region5: #{tpu_custom_call.1} parent=1 // pred_fallthru
      _
    // Predicated region
    $region6: #{tpu_custom_call.1} parent=1 // pred_check
      _
    $region7: #{tpu_custom_call.1} parent=1 // pred_check_branch
      %19 = sbr.rel (0) target = $region9
    $region8: #{tpu_custom_call.1} parent=1 // pred_region
      _
    $region9: #{tpu_custom_call.1} parent=1 // pred_fallthru
      _
    // Predicated region
    $region10: #{tpu_custom_call.1} parent=1 // pred_check
      _
    $region11: #{tpu_custom_call.1} parent=1 // pred_check_branch
      %21 = sbr.rel (0) target = $region13
    $region12: #{tpu_custom_call.1} parent=1 // pred_region
      _
    $region13: #{tpu_custom_call.1} parent=1 // pred_fallthru
      _
    // Predicated region
    $region14: #{tpu_custom_call.1} parent=1 // pred_check
      _
    $region15: #{tpu_custom_call.1} parent=1 // pred_check_branch
      %23 = sbr.rel (0) target = $region17
    $region16: #{tpu_custom_call.1} parent=1 // pred_region
      _
    $region17: #{tpu_custom_call.1} parent=1 // pred_fallthru
      _
    // Predicated region
    $region18: #{tpu_custom_call.1} parent=1 // pred_check
      _
    $region19: #{tpu_custom_call.1} parent=1 // pred_check_branch
      %25 = sbr.rel (0) target = $region21
    $region20: #{tpu_custom_call.1} parent=1 // pred_region
      _
    $region21: #{tpu_custom_call.1} parent=1 // pred_fallthru
      _
    // Predicated region
    $region22: #{tpu_custom_call.1} parent=1 // pred_check
      _
    $region23: #{tpu_custom_call.1} parent=1 // pred_check_branch
      %27 = sbr.rel (0) target = $region25
    $region24: #{tpu_custom_call.1} parent=1 // pred_region
      %s29 = ssub.s32 256, 256
      %30 = vsyncadd [#allocation6], %s29
      %s31 = sshll.u32 [#allocation5], 4
      %s32 = int_to_ptr.vmem [resolvable:$true] %s31
      %37 = dma.hbm_to_vmem [thread:$0]  %s5, 256, %s32, [#allocation6], 64, 64, 4
    $region25: #{tpu_custom_call.1} parent=1 // pred_fallthru
      _
    // Predicated region
    $region26: #{tpu_custom_call.1} parent=1 // pred_check
      _
    $region27: #{tpu_custom_call.1} parent=1 // pred_check_branch
      %39 = sbr.rel (0) target = $region29
    $region28: #{tpu_custom_call.1} parent=1 // pred_region
      _
    $region29: #{tpu_custom_call.1} parent=1 // pred_fallthru
      _
    // Predicated region
    $region30: #{tpu_custom_call.1} parent=1 // pred_check
      _
    $region31: #{tpu_custom_call.1} parent=1 // pred_check_branch
      %41 = sbr.rel (0) target = $region33
    $region32: #{tpu_custom_call.1} parent=1 // pred_region
      _
    $region33: #{tpu_custom_call.1} parent=1 // pred_fallthru
      _
    // Predicated region
    $region34: #{tpu_custom_call.1} parent=1 // pred_check
      _
    $region35: #{tpu_custom_call.1} parent=1 // pred_check_branch
      %43 = sbr.rel (0) target = $region37
    $region36: #{tpu_custom_call.1} parent=1 // pred_region
      _
    $region37: #{tpu_custom_call.1} parent=1 // pred_fallthru
      _
    // Predicated region
    $region38: #{tpu_custom_call.1} parent=1 // pred_check
      _
    $region39: #{tpu_custom_call.1} parent=1 // pred_check_branch
      %45 = sbr.rel (0) target = $region41
    $region40: #{tpu_custom_call.1} parent=1 // pred_region
      _
    $region41: #{tpu_custom_call.1} parent=1 // pred_fallthru
      _
    // Predicated region
    $region42: #{tpu_custom_call.1} parent=1 // pred_check
      _
    $region43: #{tpu_custom_call.1} parent=1 // pred_check_branch
      %47 = sbr.rel (0) target = $region45
    $region44: #{tpu_custom_call.1} parent=1 // pred_region
      %48 = dma.done [#allocation6], 256
    $region45: #{tpu_custom_call.1} parent=1 // pred_fallthru
      _
    %p50 = scmp.eq.s32.totalorder 0, 0
    // Predicated region
    $region46: #{tpu_custom_call.1} parent=1 // pred_check
      %p51 = pneg %p50
    $region47: #{tpu_custom_call.1} parent=1 // pred_check_branch
      %53 = sbr.rel (%p51) target = $region49
    $region48: #{tpu_custom_call.1} parent=1 // pred_region
      %v54 = vld [vmem:[%s1] sm:$0xff]
      %v55 = vld [vmem:[%s1 + $0x8] sm:$0xff]
      %vm56 = vcmask 261120
      %57 = vst.msk [vmem:[#allocation2] sm:$0xff] %vm56, %v54
      %58 = vst.msk [vmem:[#allocation2 + $0x8] sm:$0xff] %vm56, %v55
    $region49: #{tpu_custom_call.1} parent=1 // pred_fallthru
      _
    %v59 = vld [vmem:[%s0] sm:$0xf]
    %v60 = vld [vmem:[%s0 + $0x4] sm:$0xf]
    %v61 = vld [vmem:[%s0 + $0x8] sm:$0xf]
    %v62 = vld [vmem:[%s0 + $0xc] sm:$0xf]
    %v63 = vld [vmem:[%s0 + $0x10] sm:$0xf]
    %v64 = vld [vmem:[%s0 + $0x14] sm:$0xf]
    %v65 = vld [vmem:[%s0 + $0x18] sm:$0xf]
    %v66 = vld [vmem:[%s0 + $0x1c] sm:$0xf]
    %v67 = vld [vmem:[%s2] sm:$0xf]
    %v68 = vld [vmem:[%s2 + $0x4] sm:$0xf]
    %v69 = vld [vmem:[%s2 + $0x8] sm:$0xf]
    %v70 = vld [vmem:[%s2 + $0xc] sm:$0xf]
    %v71 = vld [vmem:[%s6] sm:$0x1]
    %v73 = vlaneseq
    %v74 = vshrl.u32 %v73, 7
    %v75 = vsub.s32 0, %v74
    %v76 = vrot.slane %v71, %v75
    %v86 = vunpack.c.l.b16 %v59
    %v87 = vunpack.c.l.b16 %v60
    %v88 = vunpack.c.l.b16 %v61
    %v89 = vunpack.c.l.b16 %v62
    %v90 = vunpack.c.l.b16 %v63
    %v91 = vunpack.c.l.b16 %v64
    %v92 = vunpack.c.l.b16 %v65
    %v93 = vunpack.c.l.b16 %v66
    %v94 = vpack.c.b16 %v87, %v86
    %v95 = vpack.c.b16 %v89, %v88
    %v96 = vpack.c.b16 %v91, %v90
    %v97 = vpack.c.b16 %v93, %v92
    %v102 = vunpack.c.l.b16 %v67
    %v103 = vunpack.c.l.b16 %v68
    %v104 = vunpack.c.l.b16 %v69
    %v105 = vunpack.c.l.b16 %v70
    %v106 = vpack.c.b16 %v103, %v102
    %v107 = vpack.c.b16 %v105, %v104
    %vm110 = vcmask 261120
    %v112 = vsel %vm110, %v94, 0
    %v115 = vsel %vm110, %v95, 0
    %v118 = vsel %vm110, %v96, 0
    %v121 = vsel %vm110, %v97, 0
    %123 = vmatprep.subr.bf16.mxu0 0
    %124 = vmatpush1.bf16.msra.mxu0 %v106
    %125 = vmatprep.subr.bf16.mxu0 0
    %126 = vmatpush1.bf16.msra.mxu0 %v107
    %127 = vmatprep.subr.bf16.mxu0 0
    %128 = vmatpush1.bf16.msra.mxu0 0
    %129 = vmatprep.subr.bf16.mxu0 0
    %130 = vmatpush1.bf16.msra.mxu0 0
    %131 = vmatprep.subr.bf16.mxu0 0
    %132 = vmatpush1.bf16.msra.mxu0 0
    %133 = vmatprep.subr.bf16.mxu0 0
    %134 = vmatpush1.bf16.msra.mxu0 0
    %135 = vmatprep.subr.bf16.mxu0 0
    %136 = vmatpush1.bf16.msra.mxu0 0
    %137 = vmatprep.subr.bf16.mxu0 0
    %138 = vmatpush1.bf16.msra.mxu0 0
    %139 = vmatprep.subr.bf16.mxu0 0
    %140 = vmatpush1.bf16.msra.mxu0 0
    %141 = vmatprep.subr.bf16.mxu0 0
    %142 = vmatpush1.bf16.msra.mxu0 0
    %143 = vmatprep.subr.bf16.mxu0 0
    %144 = vmatpush1.bf16.msra.mxu0 0
    %145 = vmatprep.subr.bf16.mxu0 0
    %146 = vmatpush1.bf16.msra.mxu0 0
    %147 = vmatprep.subr.bf16.mxu0 0
    %148 = vmatpush1.bf16.msra.mxu0 0
    %149 = vmatprep.subr.bf16.mxu0 0
    %150 = vmatpush1.bf16.msra.mxu0 0
    %151 = vmatprep.subr.bf16.mxu0 0
    %152 = vmatpush1.bf16.msra.mxu0 0
    %153 = vmatprep.subr.bf16.mxu0 0
    %154 = vmatpush1.bf16.msra.mxu0 0
    %155 = vmatprep.mubr.bf16.mxu0 0
    %156 = vmatmul.mubr.bf16.gmra.mrb[0].mxu0 %v112
    %v157 = vpop.f32.mrb[0].mxu0
    %v158 = vadd.f32 %v76, %v157
    %v159 = vpop.f32.mrb[0].mxu0
    %v160 = vpop.f32.mrb[0].mxu0
    %v161 = vadd.f32 %v76, %v160
    %v162 = vpop.f32.mrb[0].mxu0
    %163 = vmatprep.mubr.bf16.mxu0 0
    %164 = vmatmul.mubr.bf16.gmra.mrb[0].mxu0 %v115
    %v165 = vpop.f32.mrb[0].mxu0
    %v166 = vadd.f32 %v76, %v165
    %v167 = vpop.f32.mrb[0].mxu0
    %v168 = vpop.f32.mrb[0].mxu0
    %v169 = vadd.f32 %v76, %v168
    %v170 = vpop.f32.mrb[0].mxu0
    %171 = vmatprep.mubr.bf16.mxu0 0
    %172 = vmatmul.mubr.bf16.gmra.mrb[0].mxu0 %v118
    %v173 = vpop.f32.mrb[0].mxu0
    %v174 = vadd.f32 %v76, %v173
    %v175 = vpop.f32.mrb[0].mxu0
    %v176 = vpop.f32.mrb[0].mxu0
    %v177 = vadd.f32 %v76, %v176
    %v178 = vpop.f32.mrb[0].mxu0
    %179 = vmatprep.mubr.bf16.mxu0 0
    %180 = vmatmul.mubr.bf16.gmra.mrb[0].mxu0 %v121
    %v181 = vpop.f32.mrb[0].mxu0
    %v182 = vadd.f32 %v76, %v181
    %v183 = vpop.f32.mrb[0].mxu0
    %v184 = vpop.f32.mrb[0].mxu0
    %v185 = vadd.f32 %v76, %v184
    %v186 = vpop.f32.mrb[0].mxu0
    %187 = vdwg.mxu0
    %188 = vst.msk [vmem:[#allocation3] sm:$0xff] %vm110, %v158
    %189 = vst.msk [vmem:[#allocation3 + $0x8] sm:$0xff] %vm110, %v161
    %190 = vst.msk [vmem:[#allocation3 + $0x10] sm:$0xff] %vm110, %v166
    %191 = vst.msk [vmem:[#allocation3 + $0x18] sm:$0xff] %vm110, %v169
    %192 = vst.msk [vmem:[#allocation3 + $0x20] sm:$0xff] %vm110, %v174
    %193 = vst.msk [vmem:[#allocation3 + $0x28] sm:$0xff] %vm110, %v177
    %194 = vst.msk [vmem:[#allocation3 + $0x30] sm:$0xff] %vm110, %v182
    %195 = vst.msk [vmem:[#allocation3 + $0x38] sm:$0xff] %vm110, %v185
    %v196 = vld [vmem:[%s4] sm:$0xf]
    %v197 = vld [vmem:[%s4 + $0x4] sm:$0xf]
    %v198 = vld [vmem:[%s4 + $0x8] sm:$0xf]
    %v199 = vld [vmem:[%s4 + $0xc] sm:$0xf]
    %v200 = vld [vmem:[#allocation2] sm:$0xff]
    %v201 = vld [vmem:[#allocation3] sm:$0xff]
    %v202 = vpack.c.bf16 %v200, %v200
    %v207 = vunpack.c.l.b16 %v196
    %v208 = vunpack.c.l.b16 %v197
    %v209 = vunpack.c.l.b16 %v198
    %v210 = vunpack.c.l.b16 %v199
    %v211 = vpack.c.b16 %v208, %v207
    %v212 = vpack.c.b16 %v210, %v209
    %v216 = vsel %vm110, %v202, 0
    %218 = vmatprep.subr.bf16.mxu0 0
    %219 = vmatpush1.bf16.msra.mxu0 %v211
    %220 = vmatprep.subr.bf16.mxu0 0
    %221 = vmatpush1.bf16.msra.mxu0 %v212
    %222 = vmatprep.subr.bf16.mxu0 0
    %223 = vmatpush1.bf16.msra.mxu0 0
    %224 = vmatprep.subr.bf16.mxu0 0
    %225 = vmatpush1.bf16.msra.mxu0 0
    %226 = vmatprep.subr.bf16.mxu0 0
    %227 = vmatpush1.bf16.msra.mxu0 0
    %228 = vmatprep.subr.bf16.mxu0 0
    %229 = vmatpush1.bf16.msra.mxu0 0
    %230 = vmatprep.subr.bf16.mxu0 0
    %231 = vmatpush1.bf16.msra.mxu0 0
    %232 = vmatprep.subr.bf16.mxu0 0
    %233 = vmatpush1.bf16.msra.mxu0 0
    %234 = vmatprep.subr.bf16.mxu0 0
    %235 = vmatpush1.bf16.msra.mxu0 0
    %236 = vmatprep.subr.bf16.mxu0 0
    %237 = vmatpush1.bf16.msra.mxu0 0
    %238 = vmatprep.subr.bf16.mxu0 0
    %239 = vmatpush1.bf16.msra.mxu0 0
    %240 = vmatprep.subr.bf16.mxu0 0
    %241 = vmatpush1.bf16.msra.mxu0 0
    %242 = vmatprep.subr.bf16.mxu0 0
    %243 = vmatpush1.bf16.msra.mxu0 0
    %244 = vmatprep.subr.bf16.mxu0 0
    %245 = vmatpush1.bf16.msra.mxu0 0
    %246 = vmatprep.subr.bf16.mxu0 0
    %247 = vmatpush1.bf16.msra.mxu0 0
    %248 = vmatprep.subr.bf16.mxu0 0
    %249 = vmatpush1.bf16.msra.mxu0 0
    %250 = vmatprep.mubr.bf16.mxu0 0
    %251 = vmatmul.mubr.bf16.gmra.mrb[0].mxu0 %v216
    %v252 = vpop.f32.mrb[0].mxu0
    %v253 = vadd.f32 0.0, %v252
    %v254 = vpop.f32.mrb[0].mxu0
    %v255 = vpop.f32.mrb[0].mxu0
    %v256 = vpop.f32.mrb[0].mxu0
    %257 = vdwg.mxu0
    %v258 = vadd.f32 %v201, %v253
    %v259 = vtanh.pop %v258
    %260 = vst.msk [vmem:[#allocation4] sm:$0xff] %vm110, %v259
    %s261 = scalar_lea.vmem [#allocation3], 8
    %v262 = vld [vmem:[%s261] sm:$0xff]
    %v263 = vpack.c.bf16 %v259, %v259
    %v265 = vsel %vm110, %v263, 0
    %267 = vmatprep.subr.bf16.mxu0 0
    %268 = vmatpush1.bf16.msra.mxu0 %v211
    %269 = vmatprep.subr.bf16.mxu0 0
    %270 = vmatpush1.bf16.msra.mxu0 %v212
    %271 = vmatprep.subr.bf16.mxu0 0
    %272 = vmatpush1.bf16.msra.mxu0 0
    %273 = vmatprep.subr.bf16.mxu0 0
    %274 = vmatpush1.bf16.msra.mxu0 0
    %275 = vmatprep.subr.bf16.mxu0 0
    %276 = vmatpush1.bf16.msra.mxu0 0
    %277 = vmatprep.subr.bf16.mxu0 0
    %278 = vmatpush1.bf16.msra.mxu0 0
    %279 = vmatprep.subr.bf16.mxu0 0
    %280 = vmatpush1.bf16.msra.mxu0 0
    %281 = vmatprep.subr.bf16.mxu0 0
    %282 = vmatpush1.bf16.msra.mxu0 0
    %283 = vmatprep.subr.bf16.mxu0 0
    %284 = vmatpush1.bf16.msra.mxu0 0
    %285 = vmatprep.subr.bf16.mxu0 0
    %286 = vmatpush1.bf16.msra.mxu0 0
    %287 = vmatprep.subr.bf16.mxu0 0
    %288 = vmatpush1.bf16.msra.mxu0 0
    %289 = vmatprep.subr.bf16.mxu0 0
    %290 = vmatpush1.bf16.msra.mxu0 0
    %291 = vmatprep.subr.bf16.mxu0 0
    %292 = vmatpush1.bf16.msra.mxu0 0
    %293 = vmatprep.subr.bf16.mxu0 0
    %294 = vmatpush1.bf16.msra.mxu0 0
    %295 = vmatprep.subr.bf16.mxu0 0
    %296 = vmatpush1.bf16.msra.mxu0 0
    %297 = vmatprep.subr.bf16.mxu0 0
    %298 = vmatpush1.bf16.msra.mxu0 0
    %299 = vmatprep.mubr.bf16.mxu0 0
    %300 = vmatmul.mubr.bf16.gmra.mrb[0].mxu0 %v265
    %v301 = vpop.f32.mrb[0].mxu0
    %v302 = vadd.f32 0.0, %v301
    %v303 = vpop.f32.mrb[0].mxu0
    %v304 = vpop.f32.mrb[0].mxu0
    %v305 = vpop.f32.mrb[0].mxu0
    %306 = vdwg.mxu0
    %v307 = vadd.f32 %v262, %v302
    %v308 = vtanh.pop %v307
    %s309 = scalar_lea.vmem [#allocation4], 8
    %310 = vst.msk [vmem:[%s309] sm:$0xff] %vm110, %v308
    %s311 = scalar_lea.vmem [#allocation3], 16
    %v312 = vld [vmem:[%s311] sm:$0xff]
    %v313 = vpack.c.bf16 %v308, %v308
    %v315 = vsel %vm110, %v313, 0
    %317 = vmatprep.subr.bf16.mxu0 0
    %318 = vmatpush1.bf16.msra.mxu0 %v211
    %319 = vmatprep.subr.bf16.mxu0 0
    %320 = vmatpush1.bf16.msra.mxu0 %v212
    %321 = vmatprep.subr.bf16.mxu0 0
    %322 = vmatpush1.bf16.msra.mxu0 0
    %323 = vmatprep.subr.bf16.mxu0 0
    %324 = vmatpush1.bf16.msra.mxu0 0
    %325 = vmatprep.subr.bf16.mxu0 0
    %326 = vmatpush1.bf16.msra.mxu0 0
    %327 = vmatprep.subr.bf16.mxu0 0
    %328 = vmatpush1.bf16.msra.mxu0 0
    %329 = vmatprep.subr.bf16.mxu0 0
    %330 = vmatpush1.bf16.msra.mxu0 0
    %331 = vmatprep.subr.bf16.mxu0 0
    %332 = vmatpush1.bf16.msra.mxu0 0
    %333 = vmatprep.subr.bf16.mxu0 0
    %334 = vmatpush1.bf16.msra.mxu0 0
    %335 = vmatprep.subr.bf16.mxu0 0
    %336 = vmatpush1.bf16.msra.mxu0 0
    %337 = vmatprep.subr.bf16.mxu0 0
    %338 = vmatpush1.bf16.msra.mxu0 0
    %339 = vmatprep.subr.bf16.mxu0 0
    %340 = vmatpush1.bf16.msra.mxu0 0
    %341 = vmatprep.subr.bf16.mxu0 0
    %342 = vmatpush1.bf16.msra.mxu0 0
    %343 = vmatprep.subr.bf16.mxu0 0
    %344 = vmatpush1.bf16.msra.mxu0 0
    %345 = vmatprep.subr.bf16.mxu0 0
    %346 = vmatpush1.bf16.msra.mxu0 0
    %347 = vmatprep.subr.bf16.mxu0 0
    %348 = vmatpush1.bf16.msra.mxu0 0
    %349 = vmatprep.mubr.bf16.mxu0 0
    %350 = vmatmul.mubr.bf16.gmra.mrb[0].mxu0 %v315
    %v351 = vpop.f32.mrb[0].mxu0
    %v352 = vadd.f32 0.0, %v351
    %v353 = vpop.f32.mrb[0].mxu0
    %v354 = vpop.f32.mrb[0].mxu0
    %v355 = vpop.f32.mrb[0].mxu0
    %356 = vdwg.mxu0
    %v357 = vadd.f32 %v312, %v352
    %v358 = vtanh.pop %v357
    %s359 = scalar_lea.vmem [#allocation4], 16
    %360 = vst.msk [vmem:[%s359] sm:$0xff] %vm110, %v358
    %s361 = scalar_lea.vmem [#allocation3], 24
    %v362 = vld [vmem:[%s361] sm:$0xff]
    %v363 = vpack.c.bf16 %v358, %v358
    %v365 = vsel %vm110, %v363, 0
    %367 = vmatprep.subr.bf16.mxu0 0
    %368 = vmatpush1.bf16.msra.mxu0 %v211
    %369 = vmatprep.subr.bf16.mxu0 0
    %370 = vmatpush1.bf16.msra.mxu0 %v212
    %371 = vmatprep.subr.bf16.mxu0 0
    %372 = vmatpush1.bf16.msra.mxu0 0
    %373 = vmatprep.subr.bf16.mxu0 0
    %374 = vmatpush1.bf16.msra.mxu0 0
    %375 = vmatprep.subr.bf16.mxu0 0
    %376 = vmatpush1.bf16.msra.mxu0 0
    %377 = vmatprep.subr.bf16.mxu0 0
    %378 = vmatpush1.bf16.msra.mxu0 0
    %379 = vmatprep.subr.bf16.mxu0 0
    %380 = vmatpush1.bf16.msra.mxu0 0
    %381 = vmatprep.subr.bf16.mxu0 0
    %382 = vmatpush1.bf16.msra.mxu0 0
    %383 = vmatprep.subr.bf16.mxu0 0
    %384 = vmatpush1.bf16.msra.mxu0 0
    %385 = vmatprep.subr.bf16.mxu0 0
    %386 = vmatpush1.bf16.msra.mxu0 0
    %387 = vmatprep.subr.bf16.mxu0 0
    %388 = vmatpush1.bf16.msra.mxu0 0
    %389 = vmatprep.subr.bf16.mxu0 0
    %390 = vmatpush1.bf16.msra.mxu0 0
    %391 = vmatprep.subr.bf16.mxu0 0
    %392 = vmatpush1.bf16.msra.mxu0 0
    %393 = vmatprep.subr.bf16.mxu0 0
    %394 = vmatpush1.bf16.msra.mxu0 0
    %395 = vmatprep.subr.bf16.mxu0 0
    %396 = vmatpush1.bf16.msra.mxu0 0
    %397 = vmatprep.subr.bf16.mxu0 0
    %398 = vmatpush1.bf16.msra.mxu0 0
    %399 = vmatprep.mubr.bf16.mxu0 0
    %400 = vmatmul.mubr.bf16.gmra.mrb[0].mxu0 %v365
    %v401 = vpop.f32.mrb[0].mxu0
    %v402 = vadd.f32 0.0, %v401
    %v403 = vpop.f32.mrb[0].mxu0
    %v404 = vpop.f32.mrb[0].mxu0
    %v405 = vpop.f32.mrb[0].mxu0
    %406 = vdwg.mxu0
    %v407 = vadd.f32 %v362, %v402
    %v408 = vtanh.pop %v407
    %s409 = scalar_lea.vmem [#allocation4], 24
    %410 = vst.msk [vmem:[%s409] sm:$0xff] %vm110, %v408
    %s411 = scalar_lea.vmem [#allocation3], 32
    %v412 = vld [vmem:[%s411] sm:$0xff]
    %v413 = vpack.c.bf16 %v408, %v408
    %v415 = vsel %vm110, %v413, 0
    %417 = vmatprep.subr.bf16.mxu0 0
    %418 = vmatpush1.bf16.msra.mxu0 %v211
    %419 = vmatprep.subr.bf16.mxu0 0
    %420 = vmatpush1.bf16.msra.mxu0 %v212
    %421 = vmatprep.subr.bf16.mxu0 0
    %422 = vmatpush1.bf16.msra.mxu0 0
    %423 = vmatprep.subr.bf16.mxu0 0
    %424 = vmatpush1.bf16.msra.mxu0 0
    %425 = vmatprep.subr.bf16.mxu0 0
    %426 = vmatpush1.bf16.msra.mxu0 0
    %427 = vmatprep.subr.bf16.mxu0 0
    %428 = vmatpush1.bf16.msra.mxu0 0
    %429 = vmatprep.subr.bf16.mxu0 0
    %430 = vmatpush1.bf16.msra.mxu0 0
    %431 = vmatprep.subr.bf16.mxu0 0
    %432 = vmatpush1.bf16.msra.mxu0 0
    %433 = vmatprep.subr.bf16.mxu0 0
    %434 = vmatpush1.bf16.msra.mxu0 0
    %435 = vmatprep.subr.bf16.mxu0 0
    %436 = vmatpush1.bf16.msra.mxu0 0
    %437 = vmatprep.subr.bf16.mxu0 0
    %438 = vmatpush1.bf16.msra.mxu0 0
    %439 = vmatprep.subr.bf16.mxu0 0
    %440 = vmatpush1.bf16.msra.mxu0 0
    %441 = vmatprep.subr.bf16.mxu0 0
    %442 = vmatpush1.bf16.msra.mxu0 0
    %443 = vmatprep.subr.bf16.mxu0 0
    %444 = vmatpush1.bf16.msra.mxu0 0
    %445 = vmatprep.subr.bf16.mxu0 0
    %446 = vmatpush1.bf16.msra.mxu0 0
    %447 = vmatprep.subr.bf16.mxu0 0
    %448 = vmatpush1.bf16.msra.mxu0 0
    %449 = vmatprep.mubr.bf16.mxu0 0
    %450 = vmatmul.mubr.bf16.gmra.mrb[0].mxu0 %v415
    %v451 = vpop.f32.mrb[0].mxu0
    %v452 = vadd.f32 0.0, %v451
    %v453 = vpop.f32.mrb[0].mxu0
    %v454 = vpop.f32.mrb[0].mxu0
    %v455 = vpop.f32.mrb[0].mxu0
    %456 = vdwg.mxu0
    %v457 = vadd.f32 %v412, %v452
    %v458 = vtanh.pop %v457
    %s459 = scalar_lea.vmem [#allocation4], 32
    %460 = vst.msk [vmem:[%s459] sm:$0xff] %vm110, %v458
    %s461 = scalar_lea.vmem [#allocation3], 40
    %v462 = vld [vmem:[%s461] sm:$0xff]
    %v463 = vpack.c.bf16 %v458, %v458
    %v465 = vsel %vm110, %v463, 0
    %467 = vmatprep.subr.bf16.mxu0 0
    %468 = vmatpush1.bf16.msra.mxu0 %v211
    %469 = vmatprep.subr.bf16.mxu0 0
    %470 = vmatpush1.bf16.msra.mxu0 %v212
    %471 = vmatprep.subr.bf16.mxu0 0
    %472 = vmatpush1.bf16.msra.mxu0 0
    %473 = vmatprep.subr.bf16.mxu0 0
    %474 = vmatpush1.bf16.msra.mxu0 0
    %475 = vmatprep.subr.bf16.mxu0 0
    %476 = vmatpush1.bf16.msra.mxu0 0
    %477 = vmatprep.subr.bf16.mxu0 0
    %478 = vmatpush1.bf16.msra.mxu0 0
    %479 = vmatprep.subr.bf16.mxu0 0
    %480 = vmatpush1.bf16.msra.mxu0 0
    %481 = vmatprep.subr.bf16.mxu0 0
    %482 = vmatpush1.bf16.msra.mxu0 0
    %483 = vmatprep.subr.bf16.mxu0 0
    %484 = vmatpush1.bf16.msra.mxu0 0
    %485 = vmatprep.subr.bf16.mxu0 0
    %486 = vmatpush1.bf16.msra.mxu0 0
    %487 = vmatprep.subr.bf16.mxu0 0
    %488 = vmatpush1.bf16.msra.mxu0 0
    %489 = vmatprep.subr.bf16.mxu0 0
    %490 = vmatpush1.bf16.msra.mxu0 0
    %491 = vmatprep.subr.bf16.mxu0 0
    %492 = vmatpush1.bf16.msra.mxu0 0
    %493 = vmatprep.subr.bf16.mxu0 0
    %494 = vmatpush1.bf16.msra.mxu0 0
    %495 = vmatprep.subr.bf16.mxu0 0
    %496 = vmatpush1.bf16.msra.mxu0 0
    %497 = vmatprep.subr.bf16.mxu0 0
    %498 = vmatpush1.bf16.msra.mxu0 0
    %499 = vmatprep.mubr.bf16.mxu0 0
    %500 = vmatmul.mubr.bf16.gmra.mrb[0].mxu0 %v465
    %v501 = vpop.f32.mrb[0].mxu0
    %v502 = vadd.f32 0.0, %v501
    %v503 = vpop.f32.mrb[0].mxu0
    %v504 = vpop.f32.mrb[0].mxu0
    %v505 = vpop.f32.mrb[0].mxu0
    %506 = vdwg.mxu0
    %v507 = vadd.f32 %v462, %v502
    %v508 = vtanh.pop %v507
    %s509 = scalar_lea.vmem [#allocation4], 40
    %510 = vst.msk [vmem:[%s509] sm:$0xff] %vm110, %v508
    %s511 = scalar_lea.vmem [#allocation3], 48
    %v512 = vld [vmem:[%s511] sm:$0xff]
    %v513 = vpack.c.bf16 %v508, %v508
    %v515 = vsel %vm110, %v513, 0
    %517 = vmatprep.subr.bf16.mxu0 0
    %518 = vmatpush1.bf16.msra.mxu0 %v211
    %519 = vmatprep.subr.bf16.mxu0 0
    %520 = vmatpush1.bf16.msra.mxu0 %v212
    %521 = vmatprep.subr.bf16.mxu0 0
    %522 = vmatpush1.bf16.msra.mxu0 0
    %523 = vmatprep.subr.bf16.mxu0 0
    %524 = vmatpush1.bf16.msra.mxu0 0
    %525 = vmatprep.subr.bf16.mxu0 0
    %526 = vmatpush1.bf16.msra.mxu0 0
    %527 = vmatprep.subr.bf16.mxu0 0
    %528 = vmatpush1.bf16.msra.mxu0 0
    %529 = vmatprep.subr.bf16.mxu0 0
    %530 = vmatpush1.bf16.msra.mxu0 0
    %531 = vmatprep.subr.bf16.mxu0 0
    %532 = vmatpush1.bf16.msra.mxu0 0
    %533 = vmatprep.subr.bf16.mxu0 0
    %534 = vmatpush1.bf16.msra.mxu0 0
    %535 = vmatprep.subr.bf16.mxu0 0
    %536 = vmatpush1.bf16.msra.mxu0 0
    %537 = vmatprep.subr.bf16.mxu0 0
    %538 = vmatpush1.bf16.msra.mxu0 0
    %539 = vmatprep.subr.bf16.mxu0 0
    %540 = vmatpush1.bf16.msra.mxu0 0
    %541 = vmatprep.subr.bf16.mxu0 0
    %542 = vmatpush1.bf16.msra.mxu0 0
    %543 = vmatprep.subr.bf16.mxu0 0
    %544 = vmatpush1.bf16.msra.mxu0 0
    %545 = vmatprep.subr.bf16.mxu0 0
    %546 = vmatpush1.bf16.msra.mxu0 0
    %547 = vmatprep.subr.bf16.mxu0 0
    %548 = vmatpush1.bf16.msra.mxu0 0
    %549 = vmatprep.mubr.bf16.mxu0 0
    %550 = vmatmul.mubr.bf16.gmra.mrb[0].mxu0 %v515
    %v551 = vpop.f32.mrb[0].mxu0
    %v552 = vadd.f32 0.0, %v551
    %v553 = vpop.f32.mrb[0].mxu0
    %v554 = vpop.f32.mrb[0].mxu0
    %v555 = vpop.f32.mrb[0].mxu0
    %556 = vdwg.mxu0
    %v557 = vadd.f32 %v512, %v552
    %v558 = vtanh.pop %v557
    %s559 = scalar_lea.vmem [#allocation4], 48
    %560 = vst.msk [vmem:[%s559] sm:$0xff] %vm110, %v558
    %s561 = scalar_lea.vmem [#allocation3], 56
    %v562 = vld [vmem:[%s561] sm:$0xff]
    %v563 = vpack.c.bf16 %v558, %v558
    %v565 = vsel %vm110, %v563, 0
    %567 = vmatprep.subr.bf16.mxu0 0
    %568 = vmatpush1.bf16.msra.mxu0 %v211
    %569 = vmatprep.subr.bf16.mxu0 0
    %570 = vmatpush1.bf16.msra.mxu0 %v212
    %571 = vmatprep.subr.bf16.mxu0 0
    %572 = vmatpush1.bf16.msra.mxu0 0
    %573 = vmatprep.subr.bf16.mxu0 0
    %574 = vmatpush1.bf16.msra.mxu0 0
    %575 = vmatprep.subr.bf16.mxu0 0
    %576 = vmatpush1.bf16.msra.mxu0 0
    %577 = vmatprep.subr.bf16.mxu0 0
    %578 = vmatpush1.bf16.msra.mxu0 0
    %579 = vmatprep.subr.bf16.mxu0 0
    %580 = vmatpush1.bf16.msra.mxu0 0
    %581 = vmatprep.subr.bf16.mxu0 0
    %582 = vmatpush1.bf16.msra.mxu0 0
    %583 = vmatprep.subr.bf16.mxu0 0
    %584 = vmatpush1.bf16.msra.mxu0 0
    %585 = vmatprep.subr.bf16.mxu0 0
    %586 = vmatpush1.bf16.msra.mxu0 0
    %587 = vmatprep.subr.bf16.mxu0 0
    %588 = vmatpush1.bf16.msra.mxu0 0
    %589 = vmatprep.subr.bf16.mxu0 0
    %590 = vmatpush1.bf16.msra.mxu0 0
    %591 = vmatprep.subr.bf16.mxu0 0
    %592 = vmatpush1.bf16.msra.mxu0 0
    %593 = vmatprep.subr.bf16.mxu0 0
    %594 = vmatpush1.bf16.msra.mxu0 0
    %595 = vmatprep.subr.bf16.mxu0 0
    %596 = vmatpush1.bf16.msra.mxu0 0
    %597 = vmatprep.subr.bf16.mxu0 0
    %598 = vmatpush1.bf16.msra.mxu0 0
    %599 = vmatprep.mubr.bf16.mxu0 0
    %600 = vmatmul.mubr.bf16.gmra.mrb[0].mxu0 %v565
    %v601 = vpop.f32.mrb[0].mxu0
    %v602 = vadd.f32 0.0, %v601
    %v603 = vpop.f32.mrb[0].mxu0
    %v604 = vpop.f32.mrb[0].mxu0
    %v605 = vpop.f32.mrb[0].mxu0
    %606 = vdwg.mxu0
    %v607 = vadd.f32 %v562, %v602
    %v608 = vtanh.pop %v607
    %s609 = scalar_lea.vmem [#allocation4], 56
    %610 = vst.msk [vmem:[%s609] sm:$0xff] %vm110, %v608
    %611 = vst.msk [vmem:[#allocation2] sm:$0xff] %vm110, %v608
    %v612 = vld [vmem:[#allocation4] sm:$0xff]
    %v613 = vld [vmem:[#allocation4 + $0x8] sm:$0xff]
    %v614 = vld [vmem:[#allocation4 + $0x10] sm:$0xff]
    %v615 = vld [vmem:[#allocation4 + $0x18] sm:$0xff]
    %v616 = vld [vmem:[#allocation4 + $0x20] sm:$0xff]
    %v617 = vld [vmem:[#allocation4 + $0x28] sm:$0xff]
    %v618 = vld [vmem:[#allocation4 + $0x30] sm:$0xff]
    %v619 = vld [vmem:[#allocation4 + $0x38] sm:$0xff]
    %v620 = vpack.c.bf16 %v613, %v612
    %v621 = vpack.c.bf16 %v615, %v614
    %v622 = vpack.c.bf16 %v617, %v616
    %v623 = vpack.c.bf16 %v619, %v618
    %v624 = vld [vmem:[%s3] sm:$0xf]
    %v625 = vld [vmem:[%s3 + $0x4] sm:$0xf]
    %v626 = vld [vmem:[%s3 + $0x8] sm:$0xf]
    %v627 = vld [vmem:[%s3 + $0xc] sm:$0xf]
    %v628 = vld [vmem:[%s7] sm:$0x1]
    %v630 = vlaneseq
    %v631 = vshrl.u32 %v630, 7
    %v632 = vsub.s32 0, %v631
    %v633 = vrot.slane %v628, %v632
    %v639 = vunpack.c.l.b16 %v624
    %v640 = vunpack.c.l.b16 %v625
    %v641 = vunpack.c.l.b16 %v626
    %v642 = vunpack.c.l.b16 %v627
    %v643 = vpack.c.b16 %v640, %v639
    %v644 = vpack.c.b16 %v642, %v641
    %v648 = vsel %vm110, %v620, 0
    %v651 = vsel %vm110, %v621, 0
    %v654 = vsel %vm110, %v622, 0
    %v657 = vsel %vm110, %v623, 0
    %659 = vmatprep.subr.bf16.mxu0 0
    %660 = vmatpush1.bf16.msra.mxu0 %v643
    %661 = vmatprep.subr.bf16.mxu0 0
    %662 = vmatpush1.bf16.msra.mxu0 %v644
    %663 = vmatprep.subr.bf16.mxu0 0
    %664 = vmatpush1.bf16.msra.mxu0 0
    %665 = vmatprep.subr.bf16.mxu0 0
    %666 = vmatpush1.bf16.msra.mxu0 0
    %667 = vmatprep.subr.bf16.mxu0 0
    %668 = vmatpush1.bf16.msra.mxu0 0
    %669 = vmatprep.subr.bf16.mxu0 0
    %670 = vmatpush1.bf16.msra.mxu0 0
    %671 = vmatprep.subr.bf16.mxu0 0
    %672 = vmatpush1.bf16.msra.mxu0 0
    %673 = vmatprep.subr.bf16.mxu0 0
    %674 = vmatpush1.bf16.msra.mxu0 0
    %675 = vmatprep.subr.bf16.mxu0 0
    %676 = vmatpush1.bf16.msra.mxu0 0
    %677 = vmatprep.subr.bf16.mxu0 0
    %678 = vmatpush1.bf16.msra.mxu0 0
    %679 = vmatprep.subr.bf16.mxu0 0
    %680 = vmatpush1.bf16.msra.mxu0 0
    %681 = vmatprep.subr.bf16.mxu0 0
    %682 = vmatpush1.bf16.msra.mxu0 0
    %683 = vmatprep.subr.bf16.mxu0 0
    %684 = vmatpush1.bf16.msra.mxu0 0
    %685 = vmatprep.subr.bf16.mxu0 0
    %686 = vmatpush1.bf16.msra.mxu0 0
    %687 = vmatprep.subr.bf16.mxu0 0
    %688 = vmatpush1.bf16.msra.mxu0 0
    %689 = vmatprep.subr.bf16.mxu0 0
    %690 = vmatpush1.bf16.msra.mxu0 0
    %691 = vmatprep.mubr.bf16.mxu0 0
    %692 = vmatmul.mubr.bf16.gmra.mrb[0].mxu0 %v648
    %v693 = vpop.f32.mrb[0].mxu0
    %v694 = vadd.f32 %v633, %v693
    %v695 = vpop.f32.mrb[0].mxu0
    %v696 = vpop.f32.mrb[0].mxu0
    %v697 = vadd.f32 %v633, %v696
    %v698 = vpop.f32.mrb[0].mxu0
    %699 = vmatprep.mubr.bf16.mxu0 0
    %700 = vmatmul.mubr.bf16.gmra.mrb[0].mxu0 %v651
    %v701 = vpop.f32.mrb[0].mxu0
    %v702 = vadd.f32 %v633, %v701
    %v703 = vpop.f32.mrb[0].mxu0
    %v704 = vpop.f32.mrb[0].mxu0
    %v705 = vadd.f32 %v633, %v704
    %v706 = vpop.f32.mrb[0].mxu0
    %707 = vmatprep.mubr.bf16.mxu0 0
    %708 = vmatmul.mubr.bf16.gmra.mrb[0].mxu0 %v654
    %v709 = vpop.f32.mrb[0].mxu0
    %v710 = vadd.f32 %v633, %v709
    %v711 = vpop.f32.mrb[0].mxu0
    %v712 = vpop.f32.mrb[0].mxu0
    %v713 = vadd.f32 %v633, %v712
    %v714 = vpop.f32.mrb[0].mxu0
    %715 = vmatprep.mubr.bf16.mxu0 0
    %716 = vmatmul.mubr.bf16.gmra.mrb[0].mxu0 %v657
    %v717 = vpop.f32.mrb[0].mxu0
    %v718 = vadd.f32 %v633, %v717
    %v719 = vpop.f32.mrb[0].mxu0
    %v720 = vpop.f32.mrb[0].mxu0
    %v721 = vadd.f32 %v633, %v720
    %v722 = vpop.f32.mrb[0].mxu0
    %723 = vdwg.mxu0
    %724 = vst.msk [vmem:[#allocation3] sm:$0xff] %vm110, %v694
    %725 = vst.msk [vmem:[#allocation3 + $0x8] sm:$0xff] %vm110, %v697
    %726 = vst.msk [vmem:[#allocation3 + $0x10] sm:$0xff] %vm110, %v702
    %727 = vst.msk [vmem:[#allocation3 + $0x18] sm:$0xff] %vm110, %v705
    %728 = vst.msk [vmem:[#allocation3 + $0x20] sm:$0xff] %vm110, %v710
    %729 = vst.msk [vmem:[#allocation3 + $0x28] sm:$0xff] %vm110, %v713
    %730 = vst.msk [vmem:[#allocation3 + $0x30] sm:$0xff] %vm110, %v718
    %731 = vst.msk [vmem:[#allocation3 + $0x38] sm:$0xff] %vm110, %v721
    %v732 = vld [vmem:[#allocation5] sm:$0xf]
    %v733 = vld [vmem:[#allocation5 + $0x4] sm:$0xf]
    %v734 = vld [vmem:[#allocation5 + $0x8] sm:$0xf]
    %v735 = vld [vmem:[#allocation5 + $0xc] sm:$0xf]
    %s736 = scalar_lea.vmem [#allocation2], 8
    %v737 = vld [vmem:[%s736] sm:$0xff]
    %v738 = vld [vmem:[#allocation3] sm:$0xff]
    %v739 = vpack.c.bf16 %v737, %v737
    %v744 = vunpack.c.l.b16 %v732
    %v745 = vunpack.c.l.b16 %v733
    %v746 = vunpack.c.l.b16 %v734
    %v747 = vunpack.c.l.b16 %v735
    %v748 = vpack.c.b16 %v745, %v744
    %v749 = vpack.c.b16 %v747, %v746
    %v753 = vsel %vm110, %v739, 0
    %755 = vmatprep.subr.bf16.mxu0 0
    %756 = vmatpush1.bf16.msra.mxu0 %v748
    %757 = vmatprep.subr.bf16.mxu0 0
    %758 = vmatpush1.bf16.msra.mxu0 %v749
    %759 = vmatprep.subr.bf16.mxu0 0
    %760 = vmatpush1.bf16.msra.mxu0 0
    %761 = vmatprep.subr.bf16.mxu0 0
    %762 = vmatpush1.bf16.msra.mxu0 0
    %763 = vmatprep.subr.bf16.mxu0 0
    %764 = vmatpush1.bf16.msra.mxu0 0
    %765 = vmatprep.subr.bf16.mxu0 0
    %766 = vmatpush1.bf16.msra.mxu0 0
    %767 = vmatprep.subr.bf16.mxu0 0
    %768 = vmatpush1.bf16.msra.mxu0 0
    %769 = vmatprep.subr.bf16.mxu0 0
    %770 = vmatpush1.bf16.msra.mxu0 0
    %771 = vmatprep.subr.bf16.mxu0 0
    %772 = vmatpush1.bf16.msra.mxu0 0
    %773 = vmatprep.subr.bf16.mxu0 0
    %774 = vmatpush1.bf16.msra.mxu0 0
    %775 = vmatprep.subr.bf16.mxu0 0
    %776 = vmatpush1.bf16.msra.mxu0 0
    %777 = vmatprep.subr.bf16.mxu0 0
    %778 = vmatpush1.bf16.msra.mxu0 0
    %779 = vmatprep.subr.bf16.mxu0 0
    %780 = vmatpush1.bf16.msra.mxu0 0
    %781 = vmatprep.subr.bf16.mxu0 0
    %782 = vmatpush1.bf16.msra.mxu0 0
    %783 = vmatprep.subr.bf16.mxu0 0
    %784 = vmatpush1.bf16.msra.mxu0 0
    %785 = vmatprep.subr.bf16.mxu0 0
    %786 = vmatpush1.bf16.msra.mxu0 0
    %787 = vmatprep.mubr.bf16.mxu0 0
    %788 = vmatmul.mubr.bf16.gmra.mrb[0].mxu0 %v753
    %v789 = vpop.f32.mrb[0].mxu0
    %v790 = vadd.f32 0.0, %v789
    %v791 = vpop.f32.mrb[0].mxu0
    %v792 = vpop.f32.mrb[0].mxu0
    %v793 = vpop.f32.mrb[0].mxu0
    %794 = vdwg.mxu0
    %v795 = vadd.f32 %v738, %v790
    %v796 = vtanh.pop %v795
    %797 = vst.msk [vmem:[#allocation4] sm:$0xff] %vm110, %v796
    %v798 = vld [vmem:[%s261] sm:$0xff]
    %v799 = vpack.c.bf16 %v796, %v796
    %v801 = vsel %vm110, %v799, 0
    %803 = vmatprep.subr.bf16.mxu0 0
    %804 = vmatpush1.bf16.msra.mxu0 %v748
    %805 = vmatprep.subr.bf16.mxu0 0
    %806 = vmatpush1.bf16.msra.mxu0 %v749
    %807 = vmatprep.subr.bf16.mxu0 0
    %808 = vmatpush1.bf16.msra.mxu0 0
    %809 = vmatprep.subr.bf16.mxu0 0
    %810 = vmatpush1.bf16.msra.mxu0 0
    %811 = vmatprep.subr.bf16.mxu0 0
    %812 = vmatpush1.bf16.msra.mxu0 0
    %813 = vmatprep.subr.bf16.mxu0 0
    %814 = vmatpush1.bf16.msra.mxu0 0
    %815 = vmatprep.subr.bf16.mxu0 0
    %816 = vmatpush1.bf16.msra.mxu0 0
    %817 = vmatprep.subr.bf16.mxu0 0
    %818 = vmatpush1.bf16.msra.mxu0 0
    %819 = vmatprep.subr.bf16.mxu0 0
    %820 = vmatpush1.bf16.msra.mxu0 0
    %821 = vmatprep.subr.bf16.mxu0 0
    %822 = vmatpush1.bf16.msra.mxu0 0
    %823 = vmatprep.subr.bf16.mxu0 0
    %824 = vmatpush1.bf16.msra.mxu0 0
    %825 = vmatprep.subr.bf16.mxu0 0
    %826 = vmatpush1.bf16.msra.mxu0 0
    %827 = vmatprep.subr.bf16.mxu0 0
    %828 = vmatpush1.bf16.msra.mxu0 0
    %829 = vmatprep.subr.bf16.mxu0 0
    %830 = vmatpush1.bf16.msra.mxu0 0
    %831 = vmatprep.subr.bf16.mxu0 0
    %832 = vmatpush1.bf16.msra.mxu0 0
    %833 = vmatprep.subr.bf16.mxu0 0
    %834 = vmatpush1.bf16.msra.mxu0 0
    %835 = vmatprep.mubr.bf16.mxu0 0
    %836 = vmatmul.mubr.bf16.gmra.mrb[0].mxu0 %v801
    %v837 = vpop.f32.mrb[0].mxu0
    %v838 = vadd.f32 0.0, %v837
    %v839 = vpop.f32.mrb[0].mxu0
    %v840 = vpop.f32.mrb[0].mxu0
    %v841 = vpop.f32.mrb[0].mxu0
    %842 = vdwg.mxu0
    %v843 = vadd.f32 %v798, %v838
    %v844 = vtanh.pop %v843
    %845 = vst.msk [vmem:[%s309] sm:$0xff] %vm110, %v844
    %v846 = vld [vmem:[%s311] sm:$0xff]
    %v847 = vpack.c.bf16 %v844, %v844
    %v849 = vsel %vm110, %v847, 0
    %851 = vmatprep.subr.bf16.mxu0 0
    %852 = vmatpush1.bf16.msra.mxu0 %v748
    %853 = vmatprep.subr.bf16.mxu0 0
    %854 = vmatpush1.bf16.msra.mxu0 %v749
    %855 = vmatprep.subr.bf16.mxu0 0
    %856 = vmatpush1.bf16.msra.mxu0 0
    %857 = vmatprep.subr.bf16.mxu0 0
    %858 = vmatpush1.bf16.msra.mxu0 0
    %859 = vmatprep.subr.bf16.mxu0 0
    %860 = vmatpush1.bf16.msra.mxu0 0
    %861 = vmatprep.subr.bf16.mxu0 0
    %862 = vmatpush1.bf16.msra.mxu0 0
    %863 = vmatprep.subr.bf16.mxu0 0
    %864 = vmatpush1.bf16.msra.mxu0 0
    %865 = vmatprep.subr.bf16.mxu0 0
    %866 = vmatpush1.bf16.msra.mxu0 0
    %867 = vmatprep.subr.bf16.mxu0 0
    %868 = vmatpush1.bf16.msra.mxu0 0
    %869 = vmatprep.subr.bf16.mxu0 0
    %870 = vmatpush1.bf16.msra.mxu0 0
    %871 = vmatprep.subr.bf16.mxu0 0
    %872 = vmatpush1.bf16.msra.mxu0 0
    %873 = vmatprep.subr.bf16.mxu0 0
    %874 = vmatpush1.bf16.msra.mxu0 0
    %875 = vmatprep.subr.bf16.mxu0 0
    %876 = vmatpush1.bf16.msra.mxu0 0
    %877 = vmatprep.subr.bf16.mxu0 0
    %878 = vmatpush1.bf16.msra.mxu0 0
    %879 = vmatprep.subr.bf16.mxu0 0
    %880 = vmatpush1.bf16.msra.mxu0 0
    %881 = vmatprep.subr.bf16.mxu0 0
    %882 = vmatpush1.bf16.msra.mxu0 0
    %883 = vmatprep.mubr.bf16.mxu0 0
    %884 = vmatmul.mubr.bf16.gmra.mrb[0].mxu0 %v849
    %v885 = vpop.f32.mrb[0].mxu0
    %v886 = vadd.f32 0.0, %v885
    %v887 = vpop.f32.mrb[0].mxu0
    %v888 = vpop.f32.mrb[0].mxu0
    %v889 = vpop.f32.mrb[0].mxu0
    %890 = vdwg.mxu0
    %v891 = vadd.f32 %v846, %v886
    %v892 = vtanh.pop %v891
    %893 = vst.msk [vmem:[%s359] sm:$0xff] %vm110, %v892
    %v894 = vld [vmem:[%s361] sm:$0xff]
    %v895 = vpack.c.bf16 %v892, %v892
    %v897 = vsel %vm110, %v895, 0
    %899 = vmatprep.subr.bf16.mxu0 0
    %900 = vmatpush1.bf16.msra.mxu0 %v748
    %901 = vmatprep.subr.bf16.mxu0 0
    %902 = vmatpush1.bf16.msra.mxu0 %v749
    %903 = vmatprep.subr.bf16.mxu0 0
    %904 = vmatpush1.bf16.msra.mxu0 0
    %905 = vmatprep.subr.bf16.mxu0 0
    %906 = vmatpush1.bf16.msra.mxu0 0
    %907 = vmatprep.subr.bf16.mxu0 0
    %908 = vmatpush1.bf16.msra.mxu0 0
    %909 = vmatprep.subr.bf16.mxu0 0
    %910 = vmatpush1.bf16.msra.mxu0 0
    %911 = vmatprep.subr.bf16.mxu0 0
    %912 = vmatpush1.bf16.msra.mxu0 0
    %913 = vmatprep.subr.bf16.mxu0 0
    %914 = vmatpush1.bf16.msra.mxu0 0
    %915 = vmatprep.subr.bf16.mxu0 0
    %916 = vmatpush1.bf16.msra.mxu0 0
    %917 = vmatprep.subr.bf16.mxu0 0
    %918 = vmatpush1.bf16.msra.mxu0 0
    %919 = vmatprep.subr.bf16.mxu0 0
    %920 = vmatpush1.bf16.msra.mxu0 0
    %921 = vmatprep.subr.bf16.mxu0 0
    %922 = vmatpush1.bf16.msra.mxu0 0
    %923 = vmatprep.subr.bf16.mxu0 0
    %924 = vmatpush1.bf16.msra.mxu0 0
    %925 = vmatprep.subr.bf16.mxu0 0
    %926 = vmatpush1.bf16.msra.mxu0 0
    %927 = vmatprep.subr.bf16.mxu0 0
    %928 = vmatpush1.bf16.msra.mxu0 0
    %929 = vmatprep.subr.bf16.mxu0 0
    %930 = vmatpush1.bf16.msra.mxu0 0
    %931 = vmatprep.mubr.bf16.mxu0 0
    %932 = vmatmul.mubr.bf16.gmra.mrb[0].mxu0 %v897
    %v933 = vpop.f32.mrb[0].mxu0
    %v934 = vadd.f32 0.0, %v933
    %v935 = vpop.f32.mrb[0].mxu0
    %v936 = vpop.f32.mrb[0].mxu0
    %v937 = vpop.f32.mrb[0].mxu0
    %938 = vdwg.mxu0
    %v939 = vadd.f32 %v894, %v934
    %v940 = vtanh.pop %v939
    %941 = vst.msk [vmem:[%s409] sm:$0xff] %vm110, %v940
    %v942 = vld [vmem:[%s411] sm:$0xff]
    %v943 = vpack.c.bf16 %v940, %v940
    %v945 = vsel %vm110, %v943, 0
    %947 = vmatprep.subr.bf16.mxu0 0
    %948 = vmatpush1.bf16.msra.mxu0 %v748
    %949 = vmatprep.subr.bf16.mxu0 0
    %950 = vmatpush1.bf16.msra.mxu0 %v749
    %951 = vmatprep.subr.bf16.mxu0 0
    %952 = vmatpush1.bf16.msra.mxu0 0
    %953 = vmatprep.subr.bf16.mxu0 0
    %954 = vmatpush1.bf16.msra.mxu0 0
    %955 = vmatprep.subr.bf16.mxu0 0
    %956 = vmatpush1.bf16.msra.mxu0 0
    %957 = vmatprep.subr.bf16.mxu0 0
    %958 = vmatpush1.bf16.msra.mxu0 0
    %959 = vmatprep.subr.bf16.mxu0 0
    %960 = vmatpush1.bf16.msra.mxu0 0
    %961 = vmatprep.subr.bf16.mxu0 0
    %962 = vmatpush1.bf16.msra.mxu0 0
    %963 = vmatprep.subr.bf16.mxu0 0
    %964 = vmatpush1.bf16.msra.mxu0 0
    %965 = vmatprep.subr.bf16.mxu0 0
    %966 = vmatpush1.bf16.msra.mxu0 0
    %967 = vmatprep.subr.bf16.mxu0 0
    %968 = vmatpush1.bf16.msra.mxu0 0
    %969 = vmatprep.subr.bf16.mxu0 0
    %970 = vmatpush1.bf16.msra.mxu0 0
    %971 = vmatprep.subr.bf16.mxu0 0
    %972 = vmatpush1.bf16.msra.mxu0 0
    %973 = vmatprep.subr.bf16.mxu0 0
    %974 = vmatpush1.bf16.msra.mxu0 0
    %975 = vmatprep.subr.bf16.mxu0 0
    %976 = vmatpush1.bf16.msra.mxu0 0
    %977 = vmatprep.subr.bf16.mxu0 0
    %978 = vmatpush1.bf16.msra.mxu0 0
    %979 = vmatprep.mubr.bf16.mxu0 0
    %980 = vmatmul.mubr.bf16.gmra.mrb[0].mxu0 %v945
    %v981 = vpop.f32.mrb[0].mxu0
    %v982 = vadd.f32 0.0, %v981
    %v983 = vpop.f32.mrb[0].mxu0
    %v984 = vpop.f32.mrb[0].mxu0
    %v985 = vpop.f32.mrb[0].mxu0
    %986 = vdwg.mxu0
    %v987 = vadd.f32 %v942, %v982
    %v988 = vtanh.pop %v987
    %989 = vst.msk [vmem:[%s459] sm:$0xff] %vm110, %v988
    %v990 = vld [vmem:[%s461] sm:$0xff]
    %v991 = vpack.c.bf16 %v988, %v988
    %v993 = vsel %vm110, %v991, 0
    %995 = vmatprep.subr.bf16.mxu0 0
    %996 = vmatpush1.bf16.msra.mxu0 %v748
    %997 = vmatprep.subr.bf16.mxu0 0
    %998 = vmatpush1.bf16.msra.mxu0 %v749
    %999 = vmatprep.subr.bf16.mxu0 0
    %1000 = vmatpush1.bf16.msra.mxu0 0
    %1001 = vmatprep.subr.bf16.mxu0 0
    %1002 = vmatpush1.bf16.msra.mxu0 0
    %1003 = vmatprep.subr.bf16.mxu0 0
    %1004 = vmatpush1.bf16.msra.mxu0 0
    %1005 = vmatprep.subr.bf16.mxu0 0
    %1006 = vmatpush1.bf16.msra.mxu0 0
    %1007 = vmatprep.subr.bf16.mxu0 0
    %1008 = vmatpush1.bf16.msra.mxu0 0
    %1009 = vmatprep.subr.bf16.mxu0 0
    %1010 = vmatpush1.bf16.msra.mxu0 0
    %1011 = vmatprep.subr.bf16.mxu0 0
    %1012 = vmatpush1.bf16.msra.mxu0 0
    %1013 = vmatprep.subr.bf16.mxu0 0
    %1014 = vmatpush1.bf16.msra.mxu0 0
    %1015 = vmatprep.subr.bf16.mxu0 0
    %1016 = vmatpush1.bf16.msra.mxu0 0
    %1017 = vmatprep.subr.bf16.mxu0 0
    %1018 = vmatpush1.bf16.msra.mxu0 0
    %1019 = vmatprep.subr.bf16.mxu0 0
    %1020 = vmatpush1.bf16.msra.mxu0 0
    %1021 = vmatprep.subr.bf16.mxu0 0
    %1022 = vmatpush1.bf16.msra.mxu0 0
    %1023 = vmatprep.subr.bf16.mxu0 0
    %1024 = vmatpush1.bf16.msra.mxu0 0
    %1025 = vmatprep.subr.bf16.mxu0 0
    %1026 = vmatpush1.bf16.msra.mxu0 0
    %1027 = vmatprep.mubr.bf16.mxu0 0
    %1028 = vmatmul.mubr.bf16.gmra.mrb[0].mxu0 %v993
    %v1029 = vpop.f32.mrb[0].mxu0
    %v1030 = vadd.f32 0.0, %v1029
    %v1031 = vpop.f32.mrb[0].mxu0
    %v1032 = vpop.f32.mrb[0].mxu0
    %v1033 = vpop.f32.mrb[0].mxu0
    %1034 = vdwg.mxu0
    %v1035 = vadd.f32 %v990, %v1030
    %v1036 = vtanh.pop %v1035
    %1037 = vst.msk [vmem:[%s509] sm:$0xff] %vm110, %v1036
    %v1038 = vld [vmem:[%s511] sm:$0xff]
    %v1039 = vpack.c.bf16 %v1036, %v1036
    %v1041 = vsel %vm110, %v1039, 0
    %1043 = vmatprep.subr.bf16.mxu0 0
    %1044 = vmatpush1.bf16.msra.mxu0 %v748
    %1045 = vmatprep.subr.bf16.mxu0 0
    %1046 = vmatpush1.bf16.msra.mxu0 %v749
    %1047 = vmatprep.subr.bf16.mxu0 0
    %1048 = vmatpush1.bf16.msra.mxu0 0
    %1049 = vmatprep.subr.bf16.mxu0 0
    %1050 = vmatpush1.bf16.msra.mxu0 0
    %1051 = vmatprep.subr.bf16.mxu0 0
    %1052 = vmatpush1.bf16.msra.mxu0 0
    %1053 = vmatprep.subr.bf16.mxu0 0
    %1054 = vmatpush1.bf16.msra.mxu0 0
    %1055 = vmatprep.subr.bf16.mxu0 0
    %1056 = vmatpush1.bf16.msra.mxu0 0
    %1057 = vmatprep.subr.bf16.mxu0 0
    %1058 = vmatpush1.bf16.msra.mxu0 0
    %1059 = vmatprep.subr.bf16.mxu0 0
    %1060 = vmatpush1.bf16.msra.mxu0 0
    %1061 = vmatprep.subr.bf16.mxu0 0
    %1062 = vmatpush1.bf16.msra.mxu0 0
    %1063 = vmatprep.subr.bf16.mxu0 0
    %1064 = vmatpush1.bf16.msra.mxu0 0
    %1065 = vmatprep.subr.bf16.mxu0 0
    %1066 = vmatpush1.bf16.msra.mxu0 0
    %1067 = vmatprep.subr.bf16.mxu0 0
    %1068 = vmatpush1.bf16.msra.mxu0 0
    %1069 = vmatprep.subr.bf16.mxu0 0
    %1070 = vmatpush1.bf16.msra.mxu0 0
    %1071 = vmatprep.subr.bf16.mxu0 0
    %1072 = vmatpush1.bf16.msra.mxu0 0
    %1073 = vmatprep.subr.bf16.mxu0 0
    %1074 = vmatpush1.bf16.msra.mxu0 0
    %1075 = vmatprep.mubr.bf16.mxu0 0
    %1076 = vmatmul.mubr.bf16.gmra.mrb[0].mxu0 %v1041
    %v1077 = vpop.f32.mrb[0].mxu0
    %v1078 = vadd.f32 0.0, %v1077
    %v1079 = vpop.f32.mrb[0].mxu0
    %v1080 = vpop.f32.mrb[0].mxu0
    %v1081 = vpop.f32.mrb[0].mxu0
    %1082 = vdwg.mxu0
    %v1083 = vadd.f32 %v1038, %v1078
    %v1084 = vtanh.pop %v1083
    %1085 = vst.msk [vmem:[%s559] sm:$0xff] %vm110, %v1084
    %v1086 = vld [vmem:[%s561] sm:$0xff]
    %v1087 = vpack.c.bf16 %v1084, %v1084
    %v1089 = vsel %vm110, %v1087, 0
    %1091 = vmatprep.subr.bf16.mxu0 0
    %1092 = vmatpush1.bf16.msra.mxu0 %v748
    %1093 = vmatprep.subr.bf16.mxu0 0
    %1094 = vmatpush1.bf16.msra.mxu0 %v749
    %1095 = vmatprep.subr.bf16.mxu0 0
    %1096 = vmatpush1.bf16.msra.mxu0 0
    %1097 = vmatprep.subr.bf16.mxu0 0
    %1098 = vmatpush1.bf16.msra.mxu0 0
    %1099 = vmatprep.subr.bf16.mxu0 0
    %1100 = vmatpush1.bf16.msra.mxu0 0
    %1101 = vmatprep.subr.bf16.mxu0 0
    %1102 = vmatpush1.bf16.msra.mxu0 0
    %1103 = vmatprep.subr.bf16.mxu0 0
    %1104 = vmatpush1.bf16.msra.mxu0 0
    %1105 = vmatprep.subr.bf16.mxu0 0
    %1106 = vmatpush1.bf16.msra.mxu0 0
    %1107 = vmatprep.subr.bf16.mxu0 0
    %1108 = vmatpush1.bf16.msra.mxu0 0
    %1109 = vmatprep.subr.bf16.mxu0 0
    %1110 = vmatpush1.bf16.msra.mxu0 0
    %1111 = vmatprep.subr.bf16.mxu0 0
    %1112 = vmatpush1.bf16.msra.mxu0 0
    %1113 = vmatprep.subr.bf16.mxu0 0
    %1114 = vmatpush1.bf16.msra.mxu0 0
    %1115 = vmatprep.subr.bf16.mxu0 0
    %1116 = vmatpush1.bf16.msra.mxu0 0
    %1117 = vmatprep.subr.bf16.mxu0 0
    %1118 = vmatpush1.bf16.msra.mxu0 0
    %1119 = vmatprep.subr.bf16.mxu0 0
    %1120 = vmatpush1.bf16.msra.mxu0 0
    %1121 = vmatprep.subr.bf16.mxu0 0
    %1122 = vmatpush1.bf16.msra.mxu0 0
    %1123 = vmatprep.mubr.bf16.mxu0 0
    %1124 = vmatmul.mubr.bf16.gmra.mrb[0].mxu0 %v1089
    %v1125 = vpop.f32.mrb[0].mxu0
    %v1126 = vadd.f32 0.0, %v1125
    %v1127 = vpop.f32.mrb[0].mxu0
    %v1128 = vpop.f32.mrb[0].mxu0
    %v1129 = vpop.f32.mrb[0].mxu0
    %1130 = vdwg.mxu0
    %v1131 = vadd.f32 %v1086, %v1126
    %v1132 = vtanh.pop %v1131
    %1133 = vst.msk [vmem:[%s609] sm:$0xff] %vm110, %v1132
    %1134 = vst.msk [vmem:[%s736] sm:$0xff] %vm110, %v1132
    %v1135 = vld [vmem:[#allocation4] sm:$0xff]
    %v1136 = vld [vmem:[#allocation4 + $0x8] sm:$0xff]
    %v1137 = vld [vmem:[#allocation4 + $0x10] sm:$0xff]
    %v1138 = vld [vmem:[#allocation4 + $0x18] sm:$0xff]
    %v1139 = vld [vmem:[#allocation4 + $0x20] sm:$0xff]
    %v1140 = vld [vmem:[#allocation4 + $0x28] sm:$0xff]
    %v1141 = vld [vmem:[#allocation4 + $0x30] sm:$0xff]
    %v1142 = vld [vmem:[#allocation4 + $0x38] sm:$0xff]
    %v1143 = vpack.c.bf16 %v1136, %v1135
    %v1144 = vpack.c.bf16 %v1138, %v1137
    %v1145 = vpack.c.bf16 %v1140, %v1139
    %v1146 = vpack.c.bf16 %v1142, %v1141
    %v1147 = vld [vmem:[%s8] sm:$0xf]
    %v1148 = vld [vmem:[%s8 + $0x4] sm:$0xf]
    %v1149 = vld [vmem:[%s8 + $0x8] sm:$0xf]
    %v1150 = vld [vmem:[%s8 + $0xc] sm:$0xf]
    %v1151 = vld [vmem:[%s9] sm:$0x1]
    %v1153 = vlaneseq
    %v1154 = vshrl.u32 %v1153, 7
    %v1155 = vsub.s32 0, %v1154
    %v1156 = vrot.slane %v1151, %v1155
    %v1162 = vunpack.c.l.b16 %v1147
    %v1163 = vunpack.c.l.b16 %v1148
    %v1164 = vunpack.c.l.b16 %v1149
    %v1165 = vunpack.c.l.b16 %v1150
    %v1166 = vpack.c.b16 %v1163, %v1162
    %v1167 = vpack.c.b16 %v1165, %v1164
    %v1171 = vsel %vm110, %v1143, 0
    %v1174 = vsel %vm110, %v1144, 0
    %v1177 = vsel %vm110, %v1145, 0
    %v1180 = vsel %vm110, %v1146, 0
    %1182 = vmatprep.subr.bf16.mxu0 0
    %1183 = vmatpush1.bf16.msra.mxu0 %v1166
    %1184 = vmatprep.subr.bf16.mxu0 0
    %1185 = vmatpush1.bf16.msra.mxu0 %v1167
    %1186 = vmatprep.subr.bf16.mxu0 0
    %1187 = vmatpush1.bf16.msra.mxu0 0
    %1188 = vmatprep.subr.bf16.mxu0 0
    %1189 = vmatpush1.bf16.msra.mxu0 0
    %1190 = vmatprep.subr.bf16.mxu0 0
    %1191 = vmatpush1.bf16.msra.mxu0 0
    %1192 = vmatprep.subr.bf16.mxu0 0
    %1193 = vmatpush1.bf16.msra.mxu0 0
    %1194 = vmatprep.subr.bf16.mxu0 0
    %1195 = vmatpush1.bf16.msra.mxu0 0
    %1196 = vmatprep.subr.bf16.mxu0 0
    %1197 = vmatpush1.bf16.msra.mxu0 0
    %1198 = vmatprep.subr.bf16.mxu0 0
    %1199 = vmatpush1.bf16.msra.mxu0 0
    %1200 = vmatprep.subr.bf16.mxu0 0
    %1201 = vmatpush1.bf16.msra.mxu0 0
    %1202 = vmatprep.subr.bf16.mxu0 0
    %1203 = vmatpush1.bf16.msra.mxu0 0
    %1204 = vmatprep.subr.bf16.mxu0 0
    %1205 = vmatpush1.bf16.msra.mxu0 0
    %1206 = vmatprep.subr.bf16.mxu0 0
    %1207 = vmatpush1.bf16.msra.mxu0 0
    %1208 = vmatprep.subr.bf16.mxu0 0
    %1209 = vmatpush1.bf16.msra.mxu0 0
    %1210 = vmatprep.subr.bf16.mxu0 0
    %1211 = vmatpush1.bf16.msra.mxu0 0
    %1212 = vmatprep.subr.bf16.mxu0 0
    %1213 = vmatpush1.bf16.msra.mxu0 0
    %1214 = vmatprep.mubr.bf16.mxu0 0
    %1215 = vmatmul.mubr.bf16.gmra.mrb[0].mxu0 %v1171
    %v1216 = vpop.f32.mrb[0].mxu0
    %v1217 = vadd.f32 %v1156, %v1216
    %v1218 = vpop.f32.mrb[0].mxu0
    %v1219 = vpop.f32.mrb[0].mxu0
    %v1220 = vadd.f32 %v1156, %v1219
    %v1221 = vpop.f32.mrb[0].mxu0
    %1222 = vmatprep.mubr.bf16.mxu0 0
    %1223 = vmatmul.mubr.bf16.gmra.mrb[0].mxu0 %v1174
    %v1224 = vpop.f32.mrb[0].mxu0
    %v1225 = vadd.f32 %v1156, %v1224
    %v1226 = vpop.f32.mrb[0].mxu0
    %v1227 = vpop.f32.mrb[0].mxu0
    %v1228 = vadd.f32 %v1156, %v1227
    %v1229 = vpop.f32.mrb[0].mxu0
    %1230 = vmatprep.mubr.bf16.mxu0 0
    %1231 = vmatmul.mubr.bf16.gmra.mrb[0].mxu0 %v1177
    %v1232 = vpop.f32.mrb[0].mxu0
    %v1233 = vadd.f32 %v1156, %v1232
    %v1234 = vpop.f32.mrb[0].mxu0
    %v1235 = vpop.f32.mrb[0].mxu0
    %v1236 = vadd.f32 %v1156, %v1235
    %v1237 = vpop.f32.mrb[0].mxu0
    %1238 = vmatprep.mubr.bf16.mxu0 0
    %1239 = vmatmul.mubr.bf16.gmra.mrb[0].mxu0 %v1180
    %v1240 = vpop.f32.mrb[0].mxu0
    %v1241 = vadd.f32 %v1156, %v1240
    %v1242 = vpop.f32.mrb[0].mxu0
    %v1243 = vpop.f32.mrb[0].mxu0
    %v1244 = vadd.f32 %v1156, %v1243
    %v1245 = vpop.f32.mrb[0].mxu0
    %1246 = vdwg.mxu0
    %vm1247 = vcmask 130048
    %1248 = vst.msk [vmem:[%s10] sm:$0xff] %vm1247, %v1217
    %1249 = vst.msk [vmem:[%s10 + $0x8] sm:$0xff] %vm1247, %v1220
    %1250 = vst.msk [vmem:[%s10 + $0x10] sm:$0xff] %vm1247, %v1225
    %1251 = vst.msk [vmem:[%s10 + $0x18] sm:$0xff] %vm1247, %v1228
    %1252 = vst.msk [vmem:[%s10 + $0x20] sm:$0xff] %vm1247, %v1233
    %1253 = vst.msk [vmem:[%s10 + $0x28] sm:$0xff] %vm1247, %v1236
    %1254 = vst.msk [vmem:[%s10 + $0x30] sm:$0xff] %vm1247, %v1241
    %1255 = vst.msk [vmem:[%s10 + $0x38] sm:$0xff] %vm1247, %v1244
    // Predicated region
    $region50: #{tpu_custom_call.1} parent=1 // pred_check
      _
    $region51: #{tpu_custom_call.1} parent=1 // pred_check_branch
      %1257 = sbr.rel (0) target = $region53
    $region52: #{tpu_custom_call.1} parent=1 // pred_region
      _
    $region53: #{tpu_custom_call.1} parent=1 // pred_fallthru
      _
    // Predicated region
    $region54: #{tpu_custom_call.1} parent=1 // pred_check
      _
    $region55: #{tpu_custom_call.1} parent=1 // pred_check_branch
      %1259 = sbr.rel (0) target = $region57
    $region56: #{tpu_custom_call.1} parent=1 // pred_region
      _
    $region57: #{tpu_custom_call.1} parent=1 // pred_fallthru
      _
    %1260 = vsyncpa [#allocation6], 1

</llo_original>
